<compile_context>
chip_gen: v7x
topology: tpu7x:2x2x1
jax: 0.10.0
libtpu: 0.0.40
codegen_flags: <defaults>
</compile_context>

<pallas_src>
import jax
import jax.numpy as jnp
from jax import lax
from jax.experimental import pallas as pl
from jax.experimental.pallas import tpu as pltpu


def _leaky_relu(x):
    # torch.nn.LeakyReLU default negative_slope = 0.01
    return jnp.maximum(x, 0.01 * x)


def _round_up(x, m):
    return (x + m - 1) // m * m


def date_kernel(featT_ref, uid_ref, iid_ref,
                leafT_ref, userT_ref, itemT_ref,
                wpqT_ref, wpkT_ref, wfT_ref, whT_ref, whead_ref,
                colp_ref, bheadT_ref,
                hidT_ref, headsT_ref):
    T, TB = featT_ref.shape
    D, Lp = leafT_ref.shape
    Up = userT_ref.shape[1]
    Ip = itemT_ref.shape[1]

    # packed column params: [bp | bf | bh | h], each (D, 1)
    colp = colp_ref[...]
    bpT, bfT, bhT, h_col = colp[:, 0:1], colp[:, 1:2], colp[:, 2:3], colp[:, 3:4]

    # ---- embedding gathers (batch-in-lanes): table^T @ one_hot^T -> (D, TB) ----
    uid_row = uid_ref[...]                                   # (1, TB) int32
    iid_row = iid_ref[...]                                   # (1, TB) int32
    u_iota = lax.broadcasted_iota(jnp.int32, (Up, TB), 0)
    i_iota = lax.broadcasted_iota(jnp.int32, (Ip, TB), 0)
    impT = jnp.dot(userT_ref[...], (u_iota == uid_row).astype(jnp.float32),
                   preferred_element_type=jnp.float32)       # (D, TB) f32
    itmT = jnp.dot(itemT_ref[...], (i_iota == iid_row).astype(jnp.float32),
                   preferred_element_type=jnp.float32)       # (D, TB) f32

    # query_vector = importer * item ; project once: q_part^T = Wp_q^T @ query^T + bp
    queryT = impT * itmT
    q_partT = jnp.dot(wpqT_ref[...], queryT.astype(jnp.bfloat16),
                      preferred_element_type=jnp.float32) + bpT        # (D, TB)

    # ---- attention over the T leaves (batch stays on the lane axis) ----
    l_iota = lax.broadcasted_iota(jnp.int32, (Lp, TB), 0)    # hoisted out of the loop
    leafT_emb = leafT_ref[...]                               # (D, Lp) bf16
    wpkT = wpkT_ref[...]                                     # (D, D)  bf16

    leaf_t = []                                              # T x (D, TB) bf16
    alpha_t = []                                             # T x (1, TB) f32
    for t in range(T):
        f_t = featT_ref[t:t + 1, :]                          # (1, TB) int32
        onehot = (l_iota == f_t).astype(jnp.bfloat16)        # (Lp, TB)
        lf = jnp.dot(leafT_emb, onehot,
                     preferred_element_type=jnp.float32).astype(jnp.bfloat16)
        leaf_t.append(lf)                                    # exact copy of bf16 table rows
        proj = jnp.maximum(
            jnp.dot(wpkT, lf, preferred_element_type=jnp.float32) + q_partT, 0.0)
        alpha_t.append(jnp.sum(proj * h_col, axis=0, keepdims=True))   # (1, TB)

    # softmax over the T leaves (kept as (1, TB) pieces -> no concat / relayout)
    m = alpha_t[0]
    for t in range(1, T):
        m = jnp.maximum(m, alpha_t[t])
    e_t = [jnp.exp(a - m) for a in alpha_t]
    denom = e_t[0]
    for t in range(1, T):
        denom = denom + e_t[t]
    inv = pl.reciprocal(denom, approx=True)                  # (1, TB)

    # attention_vec = sum_t key * weight   (agg_type='sum'); bf16 leaf cast at the consumer
    set_vecT = jnp.zeros((D, TB), jnp.float32)
    for t in range(T):
        set_vecT = set_vecT + leaf_t[t].astype(jnp.float32) * (e_t[t] * inv)

    # ---- fusion = LeakyReLU(fussionlayer(cat(importer, item, set))), batch-in-lanes ----
    fus_inT = jnp.concatenate([impT, itmT, set_vecT], axis=0).astype(jnp.bfloat16)  # (3D, TB)
    fusionT = _leaky_relu(
        jnp.dot(wfT_ref[...], fus_inT, preferred_element_type=jnp.float32) + bfT)   # (D, TB)

    # ---- hidden = LeakyReLU(hidden_layer(fusion)) ----
    hiddenT = _leaky_relu(
        jnp.dot(whT_ref[...], fusionT.astype(jnp.bfloat16),
                preferred_element_type=jnp.float32) + bhT)                          # (D, TB)

    # ---- output heads: (2, D) @ (D, TB) -> lane-dense (2, TB) ----
    logitsT = jnp.dot(whead_ref[...], hiddenT.astype(jnp.bfloat16),
                      preferred_element_type=jnp.float32) + bheadT_ref[...]         # (2, TB)
    row = lax.broadcasted_iota(jnp.int32, logitsT.shape, 0)
    sig = 1.0 / (1.0 + jnp.exp(-logitsT))                    # exact divide for the cls prob
    headsT_ref[...] = jnp.where(row == 0, sig, jnp.maximum(logitsT, 0.0))
    hidT_ref[...] = hiddenT


def date_forward(feature, uid, item_id, params, *, tb=1024):
    B, T = feature.shape
    D = params['leaf_emb'].shape[1]

    # Batch tile on the LANE axis: multiple of 128; keep >=2 grid steps when B allows (megacore).
    TB = min(_round_up(tb, 128), _round_up(B, 128))
    if B > 128:
        TB = min(TB, _round_up((B + 1) // 2, 128))
    TB = max(TB, 128)
    Bp = _round_up(B, TB)
    pad = Bp - B

    # Only the cheap int32 index arrays are padded / transposed (never the (B,T,D) leaf tensor).
    featT = jnp.pad(feature.astype(jnp.int32).T, ((0, 0), (0, pad)))          # (T, Bp)
    uid_row = jnp.pad(uid.astype(jnp.int32)[None, :], ((0, 0), (0, pad)))     # (1, Bp)
    iid_row = jnp.pad(item_id.astype(jnp.int32)[None, :], ((0, 0), (0, pad))) # (1, Bp)

    # Transposed, zero-padded embedding tables (whole tables VMEM-resident, gathered in-kernel).
    def _padT(tbl, dtype):
        t = tbl.T.astype(dtype)                                               # (D, n)
        n = t.shape[1]
        return jnp.pad(t, ((0, 0), (0, _round_up(n, 8) - n)))
    leafT_emb = _padT(params['leaf_emb'], jnp.bfloat16)                       # (D, Lp)
    userT_emb = _padT(params['user_emb'], jnp.float32)                        # (D, Up)
    itemT_emb = _padT(params['item_emb'], jnp.float32)                        # (D, Ip)

    # bf16 matmul weights (f32 accumulation in-kernel); biases / h stay f32.
    wpqT = params['wp_q'].T.astype(jnp.bfloat16)                              # (D, D)
    wpkT = params['wp_k'].T.astype(jnp.bfloat16)                              # (D, D)
    wfT = params['wf'].T.astype(jnp.bfloat16)                                 # (D, 3D)
    whT = params['wh'].T.astype(jnp.bfloat16)                                 # (D, D)
    whead = params['whead'].astype(jnp.bfloat16)                              # (2, D)
    colp = jnp.concatenate([params['bp'].T, params['bf'].T,
                            params['bh'].T, params['h'].T], axis=1)           # (D, 4) f32
    bheadT = params['bhead'].T                                                # (2, 1) f32

    tile2 = lambda i: (i and i, i)          # (0, i)
    tile2 = lambda i: (0, i)
    const2 = lambda i: (0, 0)

    in_specs = [
        pl.BlockSpec((T, TB), tile2),               # feature^T (per-tile)
        pl.BlockSpec((1, TB), tile2),               # uid       (per-tile)
        pl.BlockSpec((1, TB), tile2),               # item_id   (per-tile)
        pl.BlockSpec(leafT_emb.shape, const2),      # leaf table  (VMEM-resident)
        pl.BlockSpec(userT_emb.shape, const2),      # user table
        pl.BlockSpec(itemT_emb.shape, const2),      # item table
        pl.BlockSpec((D, D), const2),               # wpq^T
        pl.BlockSpec((D, D), const2),               # wpk^T
        pl.BlockSpec((D, 3 * D), const2),           # wf^T
        pl.BlockSpec((D, D), const2),               # wh^T
        pl.BlockSpec((2, D), const2),               # whead (cls row, reg row)
        pl.BlockSpec((D, 4), const2),               # packed [bp | bf | bh | h]
        pl.BlockSpec((2, 1), const2),               # bhead^T
    ]
    out_specs = (
        pl.BlockSpec((D, TB), tile2),               # hidden^T  (lane-dense)
        pl.BlockSpec((2, TB), tile2),               # heads^T   (lane-dense)
    )
    out_shape = (
        jax.ShapeDtypeStruct((D, Bp), jnp.float32),
        jax.ShapeDtypeStruct((2, Bp), jnp.float32),
    )

    Lp, Up, Ip = leafT_emb.shape[1], userT_emb.shape[1], itemT_emb.shape[1]
    flops = 2 * Bp * (T * (D * Lp + D * D) + D * (Up + Ip)
                      + D * D + 3 * D * D + D * D + 2 * D)
    transcendentals = Bp * (T + 2)
    bytes_accessed = int(
        featT.size * 4 + uid_row.size * 4 + iid_row.size * 4
        + leafT_emb.size * 2 + (userT_emb.size + itemT_emb.size) * 4
        + (wpqT.size + wpkT.size + wfT.size + whT.size + whead.size) * 2
        + (colp.size + bheadT.size) * 4
        + Bp * D * 4 + Bp * 2 * 4)

    hidT, headsT = pl.pallas_call(
        date_kernel,
        out_shape=out_shape,
        grid_spec=pltpu.PrefetchScalarGridSpec(
            num_scalar_prefetch=0,
            grid=(Bp // TB,),
            in_specs=in_specs,
            out_specs=out_specs,
        ),
        compiler_params=pltpu.CompilerParams(
            dimension_semantics=("parallel",),
            vmem_limit_bytes=32 * 1024 * 1024),
        cost_estimate=pl.CostEstimate(flops=flops,
                                      transcendentals=transcendentals,
                                      bytes_accessed=bytes_accessed),
    )(featT, uid_row, iid_row, leafT_emb, userT_emb, itemT_emb,
      wpqT, wpkT, wfT, whT, whead, colp, bheadT)

    hidden = hidT[:, :B].T                       # (B, D)
    cls_out = headsT[0, :B][:, None]             # (B, 1) sigmoid
    reg_out = headsT[1, :B][:, None]             # (B, 1) relu
    return cls_out, reg_out, hidden


def date_reference(feature, uid, item_id, params):
    """Pure-JAX f32 reference of the same forward pass (for a tolerance check)."""
    leaf = params['leaf_emb'][feature]
    imp = params['user_emb'][uid]
    item = params['item_emb'][item_id]
    query = imp * item
    proj = jnp.maximum(query[:, None, :] @ params['wp_q'] + leaf @ params['wp_k']
                       + params['bp'][None, :, :], 0.0)
    alpha = jnp.sum(proj * params['h'][None, :, :], axis=-1, keepdims=True)
    w = jax.nn.softmax(alpha, axis=1)
    set_vec = jnp.sum(leaf * w, axis=1)
    fusion = _leaky_relu(jnp.concatenate([imp, item, set_vec], axis=-1) @ params['wf']
                         + params['bf'])
    hidden = _leaky_relu(fusion @ params['wh'] + params['bh'])
    logits = hidden @ params['whead'].T + params['bhead']
    cls = jax.nn.sigmoid(logits[:, 0:1])
    reg = jnp.maximum(logits[:, 1:2], 0.0)
    return cls, reg, hidden


def init_params(key, max_leaf, importer_size, item_size, dim):
    ks = jax.random.split(key, 16)

    def lin_w(k, fan_in, shape):
        bound = 1.0 / (fan_in ** 0.5)
        return jax.random.uniform(k, shape, jnp.float32, -bound, bound)

    p = {}
    # embeddings (padding_idx=0 rows zeroed for user/item)
    p['leaf_emb'] = jax.random.normal(ks[0], (max_leaf, dim), jnp.float32)
    p['user_emb'] = jax.random.normal(ks[1], (importer_size, dim), jnp.float32).at[0].set(0.0)
    p['item_emb'] = jax.random.normal(ks[2], (item_size, dim), jnp.float32).at[0].set(0.0)

    # Attention.project_weight: Linear(2*dim, dim); stored transposed and split (query | key).
    wp = lin_w(ks[3], 2 * dim, (2 * dim, dim))
    p['wp_q'] = wp[:dim]
    p['wp_k'] = wp[dim:]
    p['bp'] = lin_w(ks[4], 2 * dim, (1, dim))
    # Attention.h: torch.rand(hidden, 1) stored as a row vector (1, dim).
    p['h'] = jax.random.uniform(ks[5], (1, dim), jnp.float32)

    # fussionlayer: Linear(3*dim, dim), stored transposed (3*dim, dim).
    p['wf'] = lin_w(ks[6], 3 * dim, (3 * dim, dim))
    p['bf'] = lin_w(ks[7], 3 * dim, (1, dim))

    # hidden: Linear(dim, dim)
    p['wh'] = lin_w(ks[8], dim, (dim, dim))
    p['bh'] = lin_w(ks[9], dim, (1, dim))

    # output heads: two Linear(dim, 1) packed as rows of a (2, dim) weight + (1, 2) bias.
    wcls = lin_w(ks[10], dim, (1, dim))
    wreg = lin_w(ks[11], dim, (1, dim))
    p['whead'] = jnp.concatenate([wcls, wreg], axis=0)
    p['bhead'] = jnp.concatenate([lin_w(ks[12], dim, (1, 1)),
                                  lin_w(ks[13], dim, (1, 1))], axis=1)
    return p


if __name__ == "__main__":
    B, T, D = 8, 8, 32
    max_leaf, importer_size, item_size = 50, 20, 20

    key = jax.random.PRNGKey(0)
    kp, kf, ku, ki = jax.random.split(key, 4)
    params = init_params(kp, max_leaf, importer_size, item_size, D)

    feature = jax.random.randint(kf, (B, T), 0, max_leaf, dtype=jnp.int32)
    uid = jax.random.randint(ku, (B,), 1, importer_size, dtype=jnp.int32)
    item_id = jax.random.randint(ki, (B,), 1, item_size, dtype=jnp.int32)

    cls_out, reg_out, hidden = date_forward(feature, uid, item_id, params)
    jax.block_until_ready((cls_out, reg_out, hidden))

    assert cls_out.shape == (B, 1) and reg_out.shape == (B, 1) and hidden.shape == (B, D)

    cls_ref, reg_ref, hid_ref = date_reference(feature, uid, item_id, params)
    assert jnp.allclose(cls_out, cls_ref, atol=5e-2, rtol=5e-2)
    assert jnp.allclose(reg_out, reg_ref, atol=5e-2, rtol=5e-2)
    assert jnp.allclose(hidden, hid_ref, atol=5e-2, rtol=5e-2)

    print("KERNEL_OK")
</pallas_src>

<mosaic_0001>
module attributes {stable_mosaic.version = 11 : i64} {
  func.func @date_kernel(%arg0: i32, %arg1: memref<8x128xi32, #tpu.memory_space<vmem>>, %arg2: memref<1x128xi32, #tpu.memory_space<vmem>>, %arg3: memref<1x128xi32, #tpu.memory_space<vmem>>, %arg4: memref<32x56xbf16, #tpu.memory_space<vmem>>, %arg5: memref<32x24xf32, #tpu.memory_space<vmem>>, %arg6: memref<32x24xf32, #tpu.memory_space<vmem>>, %arg7: memref<32x32xbf16, #tpu.memory_space<vmem>>, %arg8: memref<32x32xbf16, #tpu.memory_space<vmem>>, %arg9: memref<32x96xbf16, #tpu.memory_space<vmem>>, %arg10: memref<32x32xbf16, #tpu.memory_space<vmem>>, %arg11: memref<2x32xbf16, #tpu.memory_space<vmem>>, %arg12: memref<32x4xf32, #tpu.memory_space<vmem>>, %arg13: memref<2x1xf32, #tpu.memory_space<vmem>>, %arg14: memref<32x128xf32, #tpu.memory_space<vmem>>, %arg15: memref<2x128xf32, #tpu.memory_space<vmem>>) attributes {dimension_semantics = [#tpu.dimension_semantics<parallel>], iteration_bounds = array<i64: 1>, scalar_prefetch = 0 : i64, scratch_operands = 0 : i64, tpu.core_type = #tpu.core_type<tc>, window_params = [{transform_indices = @transform_0, window_bounds = array<i64: 8, 128>}, {transform_indices = @transform_1, window_bounds = array<i64: 1, 128>}, {transform_indices = @transform_2, window_bounds = array<i64: 1, 128>}, {pipeline_mode = #tpu.pipeline_mode<synchronous>, transform_indices = @transform_3, window_bounds = array<i64: 32, 56>}, {pipeline_mode = #tpu.pipeline_mode<synchronous>, transform_indices = @transform_4, window_bounds = array<i64: 32, 24>}, {pipeline_mode = #tpu.pipeline_mode<synchronous>, transform_indices = @transform_5, window_bounds = array<i64: 32, 24>}, {pipeline_mode = #tpu.pipeline_mode<synchronous>, transform_indices = @transform_6, window_bounds = array<i64: 32, 32>}, {pipeline_mode = #tpu.pipeline_mode<synchronous>, transform_indices = @transform_7, window_bounds = array<i64: 32, 32>}, {pipeline_mode = #tpu.pipeline_mode<synchronous>, transform_indices = @transform_8, window_bounds = array<i64: 32, 96>}, {pipeline_mode = #tpu.pipeline_mode<synchronous>, transform_indices = @transform_9, window_bounds = array<i64: 32, 32>}, {pipeline_mode = #tpu.pipeline_mode<synchronous>, transform_indices = @transform_10, window_bounds = array<i64: 2, 32>}, {pipeline_mode = #tpu.pipeline_mode<synchronous>, transform_indices = @transform_11, window_bounds = array<i64: 32, 4>}, {pipeline_mode = #tpu.pipeline_mode<synchronous>, transform_indices = @transform_12, window_bounds = array<i64: 2, 1>}, {transform_indices = @transform_13, window_bounds = array<i64: 32, 128>}, {transform_indices = @transform_14, window_bounds = array<i64: 2, 128>}]} {
    %c0 = arith.constant 0 : index
    %c0_0 = arith.constant 0 : index
    %0 = vector.load %arg12[%c0, %c0_0] : memref<32x4xf32, #tpu.memory_space<vmem>>, vector<32x4xf32>
    %1 = vector.extract_strided_slice %0 {offsets = [0, 0], sizes = [32, 1], strides = [1, 1]} : vector<32x4xf32> to vector<32x1xf32>
    %2 = vector.extract_strided_slice %0 {offsets = [0, 1], sizes = [32, 1], strides = [1, 1]} : vector<32x4xf32> to vector<32x1xf32>
    %3 = vector.extract_strided_slice %0 {offsets = [0, 2], sizes = [32, 1], strides = [1, 1]} : vector<32x4xf32> to vector<32x1xf32>
    %4 = vector.extract_strided_slice %0 {offsets = [0, 3], sizes = [32, 1], strides = [1, 1]} : vector<32x4xf32> to vector<32x1xf32>
    %c0_1 = arith.constant 0 : index
    %c0_2 = arith.constant 0 : index
    %5 = vector.load %arg2[%c0_1, %c0_2] : memref<1x128xi32, #tpu.memory_space<vmem>>, vector<1x128xi32>
    %c0_3 = arith.constant 0 : index
    %c0_4 = arith.constant 0 : index
    %6 = vector.load %arg3[%c0_3, %c0_4] : memref<1x128xi32, #tpu.memory_space<vmem>>, vector<1x128xi32>
    %7 = tpu.iota {dimensions = array<i32: 0>} : vector<24x128xi32>
    %8 = tpu.iota {dimensions = array<i32: 0>} : vector<24x128xi32>
    %c0_5 = arith.constant 0 : index
    %c0_6 = arith.constant 0 : index
    %9 = vector.load %arg5[%c0_5, %c0_6] : memref<32x24xf32, #tpu.memory_space<vmem>>, vector<32x24xf32>
    %10 = vector.broadcast %5 : vector<1x128xi32> to vector<24x128xi32>
    %11 = arith.cmpi eq, %7, %10 : vector<24x128xi32>
    %12 = arith.extui %11 : vector<24x128xi1> to vector<24x128xi32>
    %13 = arith.sitofp %12 : vector<24x128xi32> to vector<24x128xf32>
    %cst = arith.constant dense<0.000000e+00> : vector<32x128xf32>
    %14 = tpu.matmul %9, %13, %cst {dimension_numbers = #tpu.dot_dimension_numbers<[1], [0], [0], [1], [0, 0, 1, 1], [], []>} : vector<32x24xf32>, vector<24x128xf32>, vector<32x128xf32> -> vector<32x128xf32>
    %c0_7 = arith.constant 0 : index
    %c0_8 = arith.constant 0 : index
    %15 = vector.load %arg6[%c0_7, %c0_8] : memref<32x24xf32, #tpu.memory_space<vmem>>, vector<32x24xf32>
    %16 = vector.broadcast %6 : vector<1x128xi32> to vector<24x128xi32>
    %17 = arith.cmpi eq, %8, %16 : vector<24x128xi32>
    %18 = arith.extui %17 : vector<24x128xi1> to vector<24x128xi32>
    %19 = arith.sitofp %18 : vector<24x128xi32> to vector<24x128xf32>
    %cst_9 = arith.constant dense<0.000000e+00> : vector<32x128xf32>
    %20 = tpu.matmul %15, %19, %cst_9 {dimension_numbers = #tpu.dot_dimension_numbers<[1], [0], [0], [1], [0, 0, 1, 1], [], []>} : vector<32x24xf32>, vector<24x128xf32>, vector<32x128xf32> -> vector<32x128xf32>
    %21 = arith.mulf %14, %20 : vector<32x128xf32>
    %c0_10 = arith.constant 0 : index
    %c0_11 = arith.constant 0 : index
    %22 = vector.load %arg7[%c0_10, %c0_11] : memref<32x32xbf16, #tpu.memory_space<vmem>>, vector<32x32xbf16>
    %23 = arith.truncf %21 : vector<32x128xf32> to vector<32x128xbf16>
    %cst_12 = arith.constant dense<0.000000e+00> : vector<32x128xf32>
    %24 = tpu.matmul %22, %23, %cst_12 {dimension_numbers = #tpu.dot_dimension_numbers<[1], [0], [0], [1], [0, 0, 1, 1], [], []>} : vector<32x32xbf16>, vector<32x128xbf16>, vector<32x128xf32> -> vector<32x128xf32>
    %25 = vector.broadcast %1 : vector<32x1xf32> to vector<32x128xf32>
    %26 = arith.addf %24, %25 : vector<32x128xf32>
    %27 = tpu.iota {dimensions = array<i32: 0>} : vector<56x128xi32>
    %c0_13 = arith.constant 0 : index
    %c0_14 = arith.constant 0 : index
    %28 = vector.load %arg4[%c0_13, %c0_14] : memref<32x56xbf16, #tpu.memory_space<vmem>>, vector<32x56xbf16>
    %c0_15 = arith.constant 0 : index
    %c0_16 = arith.constant 0 : index
    %29 = vector.load %arg8[%c0_15, %c0_16] : memref<32x32xbf16, #tpu.memory_space<vmem>>, vector<32x32xbf16>
    %c0_17 = arith.constant 0 : index
    %c0_18 = arith.constant 0 : index
    %30 = vector.load %arg1[%c0_17, %c0_18] : memref<8x128xi32, #tpu.memory_space<vmem>>, vector<1x128xi32>
    %31 = vector.broadcast %30 : vector<1x128xi32> to vector<56x128xi32>
    %32 = arith.cmpi eq, %27, %31 : vector<56x128xi32>
    %33 = arith.extui %32 : vector<56x128xi1> to vector<56x128xi32>
    %34 = arith.sitofp %33 : vector<56x128xi32> to vector<56x128xf32>
    %35 = arith.truncf %34 : vector<56x128xf32> to vector<56x128xbf16>
    %cst_19 = arith.constant dense<0.000000e+00> : vector<32x128xf32>
    %36 = tpu.matmul %28, %35, %cst_19 {dimension_numbers = #tpu.dot_dimension_numbers<[1], [0], [0], [1], [0, 0, 1, 1], [], []>} : vector<32x56xbf16>, vector<56x128xbf16>, vector<32x128xf32> -> vector<32x128xf32>
    %37 = arith.truncf %36 : vector<32x128xf32> to vector<32x128xbf16>
    %cst_20 = arith.constant dense<0.000000e+00> : vector<32x128xf32>
    %38 = tpu.matmul %29, %37, %cst_20 {dimension_numbers = #tpu.dot_dimension_numbers<[1], [0], [0], [1], [0, 0, 1, 1], [], []>} : vector<32x32xbf16>, vector<32x128xbf16>, vector<32x128xf32> -> vector<32x128xf32>
    %39 = arith.addf %38, %26 : vector<32x128xf32>
    %cst_21 = arith.constant 0.000000e+00 : f32
    %40 = vector.broadcast %cst_21 : f32 to vector<32x128xf32>
    %41 = arith.maximumf %39, %40 : vector<32x128xf32>
    %42 = vector.broadcast %4 : vector<32x1xf32> to vector<32x128xf32>
    %43 = arith.mulf %41, %42 : vector<32x128xf32>
    %cst_22 = arith.constant dense<0.000000e+00> : vector<128xf32>
    %44 = vector.multi_reduction <add>, %43, %cst_22 [0] : vector<32x128xf32> to vector<128xf32>
    %45 = vector.shape_cast %44 : vector<128xf32> to vector<1x128xf32>
    %c1 = arith.constant 1 : index
    %c0_23 = arith.constant 0 : index
    %46 = vector.load %arg1[%c1, %c0_23] : memref<8x128xi32, #tpu.memory_space<vmem>>, vector<1x128xi32>
    %47 = vector.broadcast %46 : vector<1x128xi32> to vector<56x128xi32>
    %48 = arith.cmpi eq, %27, %47 : vector<56x128xi32>
    %49 = arith.extui %48 : vector<56x128xi1> to vector<56x128xi32>
    %50 = arith.sitofp %49 : vector<56x128xi32> to vector<56x128xf32>
    %51 = arith.truncf %50 : vector<56x128xf32> to vector<56x128xbf16>
    %cst_24 = arith.constant dense<0.000000e+00> : vector<32x128xf32>
    %52 = tpu.matmul %28, %51, %cst_24 {dimension_numbers = #tpu.dot_dimension_numbers<[1], [0], [0], [1], [0, 0, 1, 1], [], []>} : vector<32x56xbf16>, vector<56x128xbf16>, vector<32x128xf32> -> vector<32x128xf32>
    %53 = arith.truncf %52 : vector<32x128xf32> to vector<32x128xbf16>
    %cst_25 = arith.constant dense<0.000000e+00> : vector<32x128xf32>
    %54 = tpu.matmul %29, %53, %cst_25 {dimension_numbers = #tpu.dot_dimension_numbers<[1], [0], [0], [1], [0, 0, 1, 1], [], []>} : vector<32x32xbf16>, vector<32x128xbf16>, vector<32x128xf32> -> vector<32x128xf32>
    %55 = arith.addf %54, %26 : vector<32x128xf32>
    %cst_26 = arith.constant 0.000000e+00 : f32
    %56 = vector.broadcast %cst_26 : f32 to vector<32x128xf32>
    %57 = arith.maximumf %55, %56 : vector<32x128xf32>
    %58 = vector.broadcast %4 : vector<32x1xf32> to vector<32x128xf32>
    %59 = arith.mulf %57, %58 : vector<32x128xf32>
    %cst_27 = arith.constant dense<0.000000e+00> : vector<128xf32>
    %60 = vector.multi_reduction <add>, %59, %cst_27 [0] : vector<32x128xf32> to vector<128xf32>
    %61 = vector.shape_cast %60 : vector<128xf32> to vector<1x128xf32>
    %c2 = arith.constant 2 : index
    %c0_28 = arith.constant 0 : index
    %62 = vector.load %arg1[%c2, %c0_28] : memref<8x128xi32, #tpu.memory_space<vmem>>, vector<1x128xi32>
    %63 = vector.broadcast %62 : vector<1x128xi32> to vector<56x128xi32>
    %64 = arith.cmpi eq, %27, %63 : vector<56x128xi32>
    %65 = arith.extui %64 : vector<56x128xi1> to vector<56x128xi32>
    %66 = arith.sitofp %65 : vector<56x128xi32> to vector<56x128xf32>
    %67 = arith.truncf %66 : vector<56x128xf32> to vector<56x128xbf16>
    %cst_29 = arith.constant dense<0.000000e+00> : vector<32x128xf32>
    %68 = tpu.matmul %28, %67, %cst_29 {dimension_numbers = #tpu.dot_dimension_numbers<[1], [0], [0], [1], [0, 0, 1, 1], [], []>} : vector<32x56xbf16>, vector<56x128xbf16>, vector<32x128xf32> -> vector<32x128xf32>
    %69 = arith.truncf %68 : vector<32x128xf32> to vector<32x128xbf16>
    %cst_30 = arith.constant dense<0.000000e+00> : vector<32x128xf32>
    %70 = tpu.matmul %29, %69, %cst_30 {dimension_numbers = #tpu.dot_dimension_numbers<[1], [0], [0], [1], [0, 0, 1, 1], [], []>} : vector<32x32xbf16>, vector<32x128xbf16>, vector<32x128xf32> -> vector<32x128xf32>
    %71 = arith.addf %70, %26 : vector<32x128xf32>
    %cst_31 = arith.constant 0.000000e+00 : f32
    %72 = vector.broadcast %cst_31 : f32 to vector<32x128xf32>
    %73 = arith.maximumf %71, %72 : vector<32x128xf32>
    %74 = vector.broadcast %4 : vector<32x1xf32> to vector<32x128xf32>
    %75 = arith.mulf %73, %74 : vector<32x128xf32>
    %cst_32 = arith.constant dense<0.000000e+00> : vector<128xf32>
    %76 = vector.multi_reduction <add>, %75, %cst_32 [0] : vector<32x128xf32> to vector<128xf32>
    %77 = vector.shape_cast %76 : vector<128xf32> to vector<1x128xf32>
    %c3 = arith.constant 3 : index
    %c0_33 = arith.constant 0 : index
    %78 = vector.load %arg1[%c3, %c0_33] : memref<8x128xi32, #tpu.memory_space<vmem>>, vector<1x128xi32>
    %79 = vector.broadcast %78 : vector<1x128xi32> to vector<56x128xi32>
    %80 = arith.cmpi eq, %27, %79 : vector<56x128xi32>
    %81 = arith.extui %80 : vector<56x128xi1> to vector<56x128xi32>
    %82 = arith.sitofp %81 : vector<56x128xi32> to vector<56x128xf32>
    %83 = arith.truncf %82 : vector<56x128xf32> to vector<56x128xbf16>
    %cst_34 = arith.constant dense<0.000000e+00> : vector<32x128xf32>
    %84 = tpu.matmul %28, %83, %cst_34 {dimension_numbers = #tpu.dot_dimension_numbers<[1], [0], [0], [1], [0, 0, 1, 1], [], []>} : vector<32x56xbf16>, vector<56x128xbf16>, vector<32x128xf32> -> vector<32x128xf32>
    %85 = arith.truncf %84 : vector<32x128xf32> to vector<32x128xbf16>
    %cst_35 = arith.constant dense<0.000000e+00> : vector<32x128xf32>
    %86 = tpu.matmul %29, %85, %cst_35 {dimension_numbers = #tpu.dot_dimension_numbers<[1], [0], [0], [1], [0, 0, 1, 1], [], []>} : vector<32x32xbf16>, vector<32x128xbf16>, vector<32x128xf32> -> vector<32x128xf32>
    %87 = arith.addf %86, %26 : vector<32x128xf32>
    %cst_36 = arith.constant 0.000000e+00 : f32
    %88 = vector.broadcast %cst_36 : f32 to vector<32x128xf32>
    %89 = arith.maximumf %87, %88 : vector<32x128xf32>
    %90 = vector.broadcast %4 : vector<32x1xf32> to vector<32x128xf32>
    %91 = arith.mulf %89, %90 : vector<32x128xf32>
    %cst_37 = arith.constant dense<0.000000e+00> : vector<128xf32>
    %92 = vector.multi_reduction <add>, %91, %cst_37 [0] : vector<32x128xf32> to vector<128xf32>
    %93 = vector.shape_cast %92 : vector<128xf32> to vector<1x128xf32>
    %c4 = arith.constant 4 : index
    %c0_38 = arith.constant 0 : index
    %94 = vector.load %arg1[%c4, %c0_38] : memref<8x128xi32, #tpu.memory_space<vmem>>, vector<1x128xi32>
    %95 = vector.broadcast %94 : vector<1x128xi32> to vector<56x128xi32>
    %96 = arith.cmpi eq, %27, %95 : vector<56x128xi32>
    %97 = arith.extui %96 : vector<56x128xi1> to vector<56x128xi32>
    %98 = arith.sitofp %97 : vector<56x128xi32> to vector<56x128xf32>
    %99 = arith.truncf %98 : vector<56x128xf32> to vector<56x128xbf16>
    %cst_39 = arith.constant dense<0.000000e+00> : vector<32x128xf32>
    %100 = tpu.matmul %28, %99, %cst_39 {dimension_numbers = #tpu.dot_dimension_numbers<[1], [0], [0], [1], [0, 0, 1, 1], [], []>} : vector<32x56xbf16>, vector<56x128xbf16>, vector<32x128xf32> -> vector<32x128xf32>
    %101 = arith.truncf %100 : vector<32x128xf32> to vector<32x128xbf16>
    %cst_40 = arith.constant dense<0.000000e+00> : vector<32x128xf32>
    %102 = tpu.matmul %29, %101, %cst_40 {dimension_numbers = #tpu.dot_dimension_numbers<[1], [0], [0], [1], [0, 0, 1, 1], [], []>} : vector<32x32xbf16>, vector<32x128xbf16>, vector<32x128xf32> -> vector<32x128xf32>
    %103 = arith.addf %102, %26 : vector<32x128xf32>
    %cst_41 = arith.constant 0.000000e+00 : f32
    %104 = vector.broadcast %cst_41 : f32 to vector<32x128xf32>
    %105 = arith.maximumf %103, %104 : vector<32x128xf32>
    %106 = vector.broadcast %4 : vector<32x1xf32> to vector<32x128xf32>
    %107 = arith.mulf %105, %106 : vector<32x128xf32>
    %cst_42 = arith.constant dense<0.000000e+00> : vector<128xf32>
    %108 = vector.multi_reduction <add>, %107, %cst_42 [0] : vector<32x128xf32> to vector<128xf32>
    %109 = vector.shape_cast %108 : vector<128xf32> to vector<1x128xf32>
    %c5 = arith.constant 5 : index
    %c0_43 = arith.constant 0 : index
    %110 = vector.load %arg1[%c5, %c0_43] : memref<8x128xi32, #tpu.memory_space<vmem>>, vector<1x128xi32>
    %111 = vector.broadcast %110 : vector<1x128xi32> to vector<56x128xi32>
    %112 = arith.cmpi eq, %27, %111 : vector<56x128xi32>
    %113 = arith.extui %112 : vector<56x128xi1> to vector<56x128xi32>
    %114 = arith.sitofp %113 : vector<56x128xi32> to vector<56x128xf32>
    %115 = arith.truncf %114 : vector<56x128xf32> to vector<56x128xbf16>
    %cst_44 = arith.constant dense<0.000000e+00> : vector<32x128xf32>
    %116 = tpu.matmul %28, %115, %cst_44 {dimension_numbers = #tpu.dot_dimension_numbers<[1], [0], [0], [1], [0, 0, 1, 1], [], []>} : vector<32x56xbf16>, vector<56x128xbf16>, vector<32x128xf32> -> vector<32x128xf32>
    %117 = arith.truncf %116 : vector<32x128xf32> to vector<32x128xbf16>
    %cst_45 = arith.constant dense<0.000000e+00> : vector<32x128xf32>
    %118 = tpu.matmul %29, %117, %cst_45 {dimension_numbers = #tpu.dot_dimension_numbers<[1], [0], [0], [1], [0, 0, 1, 1], [], []>} : vector<32x32xbf16>, vector<32x128xbf16>, vector<32x128xf32> -> vector<32x128xf32>
    %119 = arith.addf %118, %26 : vector<32x128xf32>
    %cst_46 = arith.constant 0.000000e+00 : f32
    %120 = vector.broadcast %cst_46 : f32 to vector<32x128xf32>
    %121 = arith.maximumf %119, %120 : vector<32x128xf32>
    %122 = vector.broadcast %4 : vector<32x1xf32> to vector<32x128xf32>
    %123 = arith.mulf %121, %122 : vector<32x128xf32>
    %cst_47 = arith.constant dense<0.000000e+00> : vector<128xf32>
    %124 = vector.multi_reduction <add>, %123, %cst_47 [0] : vector<32x128xf32> to vector<128xf32>
    %125 = vector.shape_cast %124 : vector<128xf32> to vector<1x128xf32>
    %c6 = arith.constant 6 : index
    %c0_48 = arith.constant 0 : index
    %126 = vector.load %arg1[%c6, %c0_48] : memref<8x128xi32, #tpu.memory_space<vmem>>, vector<1x128xi32>
    %127 = vector.broadcast %126 : vector<1x128xi32> to vector<56x128xi32>
    %128 = arith.cmpi eq, %27, %127 : vector<56x128xi32>
    %129 = arith.extui %128 : vector<56x128xi1> to vector<56x128xi32>
    %130 = arith.sitofp %129 : vector<56x128xi32> to vector<56x128xf32>
    %131 = arith.truncf %130 : vector<56x128xf32> to vector<56x128xbf16>
    %cst_49 = arith.constant dense<0.000000e+00> : vector<32x128xf32>
    %132 = tpu.matmul %28, %131, %cst_49 {dimension_numbers = #tpu.dot_dimension_numbers<[1], [0], [0], [1], [0, 0, 1, 1], [], []>} : vector<32x56xbf16>, vector<56x128xbf16>, vector<32x128xf32> -> vector<32x128xf32>
    %133 = arith.truncf %132 : vector<32x128xf32> to vector<32x128xbf16>
    %cst_50 = arith.constant dense<0.000000e+00> : vector<32x128xf32>
    %134 = tpu.matmul %29, %133, %cst_50 {dimension_numbers = #tpu.dot_dimension_numbers<[1], [0], [0], [1], [0, 0, 1, 1], [], []>} : vector<32x32xbf16>, vector<32x128xbf16>, vector<32x128xf32> -> vector<32x128xf32>
    %135 = arith.addf %134, %26 : vector<32x128xf32>
    %cst_51 = arith.constant 0.000000e+00 : f32
    %136 = vector.broadcast %cst_51 : f32 to vector<32x128xf32>
    %137 = arith.maximumf %135, %136 : vector<32x128xf32>
    %138 = vector.broadcast %4 : vector<32x1xf32> to vector<32x128xf32>
    %139 = arith.mulf %137, %138 : vector<32x128xf32>
    %cst_52 = arith.constant dense<0.000000e+00> : vector<128xf32>
    %140 = vector.multi_reduction <add>, %139, %cst_52 [0] : vector<32x128xf32> to vector<128xf32>
    %141 = vector.shape_cast %140 : vector<128xf32> to vector<1x128xf32>
    %c7 = arith.constant 7 : index
    %c0_53 = arith.constant 0 : index
    %142 = vector.load %arg1[%c7, %c0_53] : memref<8x128xi32, #tpu.memory_space<vmem>>, vector<1x128xi32>
    %143 = vector.broadcast %142 : vector<1x128xi32> to vector<56x128xi32>
    %144 = arith.cmpi eq, %27, %143 : vector<56x128xi32>
    %145 = arith.extui %144 : vector<56x128xi1> to vector<56x128xi32>
    %146 = arith.sitofp %145 : vector<56x128xi32> to vector<56x128xf32>
    %147 = arith.truncf %146 : vector<56x128xf32> to vector<56x128xbf16>
    %cst_54 = arith.constant dense<0.000000e+00> : vector<32x128xf32>
    %148 = tpu.matmul %28, %147, %cst_54 {dimension_numbers = #tpu.dot_dimension_numbers<[1], [0], [0], [1], [0, 0, 1, 1], [], []>} : vector<32x56xbf16>, vector<56x128xbf16>, vector<32x128xf32> -> vector<32x128xf32>
    %149 = arith.truncf %148 : vector<32x128xf32> to vector<32x128xbf16>
    %cst_55 = arith.constant dense<0.000000e+00> : vector<32x128xf32>
    %150 = tpu.matmul %29, %149, %cst_55 {dimension_numbers = #tpu.dot_dimension_numbers<[1], [0], [0], [1], [0, 0, 1, 1], [], []>} : vector<32x32xbf16>, vector<32x128xbf16>, vector<32x128xf32> -> vector<32x128xf32>
    %151 = arith.addf %150, %26 : vector<32x128xf32>
    %cst_56 = arith.constant 0.000000e+00 : f32
    %152 = vector.broadcast %cst_56 : f32 to vector<32x128xf32>
    %153 = arith.maximumf %151, %152 : vector<32x128xf32>
    %154 = vector.broadcast %4 : vector<32x1xf32> to vector<32x128xf32>
    %155 = arith.mulf %153, %154 : vector<32x128xf32>
    %cst_57 = arith.constant dense<0.000000e+00> : vector<128xf32>
    %156 = vector.multi_reduction <add>, %155, %cst_57 [0] : vector<32x128xf32> to vector<128xf32>
    %157 = vector.shape_cast %156 : vector<128xf32> to vector<1x128xf32>
    %158 = arith.maximumf %45, %61 : vector<1x128xf32>
    %159 = arith.maximumf %158, %77 : vector<1x128xf32>
    %160 = arith.maximumf %159, %93 : vector<1x128xf32>
    %161 = arith.maximumf %160, %109 : vector<1x128xf32>
    %162 = arith.maximumf %161, %125 : vector<1x128xf32>
    %163 = arith.maximumf %162, %141 : vector<1x128xf32>
    %164 = arith.maximumf %163, %157 : vector<1x128xf32>
    %165 = arith.subf %45, %164 : vector<1x128xf32>
    %166 = math.exp %165 : vector<1x128xf32>
    %167 = arith.subf %61, %164 : vector<1x128xf32>
    %168 = math.exp %167 : vector<1x128xf32>
    %169 = arith.subf %77, %164 : vector<1x128xf32>
    %170 = math.exp %169 : vector<1x128xf32>
    %171 = arith.subf %93, %164 : vector<1x128xf32>
    %172 = math.exp %171 : vector<1x128xf32>
    %173 = arith.subf %109, %164 : vector<1x128xf32>
    %174 = math.exp %173 : vector<1x128xf32>
    %175 = arith.subf %125, %164 : vector<1x128xf32>
    %176 = math.exp %175 : vector<1x128xf32>
    %177 = arith.subf %141, %164 : vector<1x128xf32>
    %178 = math.exp %177 : vector<1x128xf32>
    %179 = arith.subf %157, %164 : vector<1x128xf32>
    %180 = math.exp %179 : vector<1x128xf32>
    %181 = arith.addf %166, %168 : vector<1x128xf32>
    %182 = arith.addf %181, %170 : vector<1x128xf32>
    %183 = arith.addf %182, %172 : vector<1x128xf32>
    %184 = arith.addf %183, %174 : vector<1x128xf32>
    %185 = arith.addf %184, %176 : vector<1x128xf32>
    %186 = arith.addf %185, %178 : vector<1x128xf32>
    %187 = arith.addf %186, %180 : vector<1x128xf32>
    %188 = tpu.reciprocal %187 {approx = true} : vector<1x128xf32> -> vector<1x128xf32>
    %cst_58 = arith.constant 0.000000e+00 : f32
    %189 = vector.broadcast %cst_58 : f32 to vector<32x128xf32>
    %190 = arith.extf %37 : vector<32x128xbf16> to vector<32x128xf32>
    %191 = arith.mulf %166, %188 : vector<1x128xf32>
    %192 = vector.broadcast %191 : vector<1x128xf32> to vector<32x128xf32>
    %193 = arith.mulf %190, %192 : vector<32x128xf32>
    %194 = arith.addf %189, %193 : vector<32x128xf32>
    %195 = arith.extf %53 : vector<32x128xbf16> to vector<32x128xf32>
    %196 = arith.mulf %168, %188 : vector<1x128xf32>
    %197 = vector.broadcast %196 : vector<1x128xf32> to vector<32x128xf32>
    %198 = arith.mulf %195, %197 : vector<32x128xf32>
    %199 = arith.addf %194, %198 : vector<32x128xf32>
    %200 = arith.extf %69 : vector<32x128xbf16> to vector<32x128xf32>
    %201 = arith.mulf %170, %188 : vector<1x128xf32>
    %202 = vector.broadcast %201 : vector<1x128xf32> to vector<32x128xf32>
    %203 = arith.mulf %200, %202 : vector<32x128xf32>
    %204 = arith.addf %199, %203 : vector<32x128xf32>
    %205 = arith.extf %85 : vector<32x128xbf16> to vector<32x128xf32>
    %206 = arith.mulf %172, %188 : vector<1x128xf32>
    %207 = vector.broadcast %206 : vector<1x128xf32> to vector<32x128xf32>
    %208 = arith.mulf %205, %207 : vector<32x128xf32>
    %209 = arith.addf %204, %208 : vector<32x128xf32>
    %210 = arith.extf %101 : vector<32x128xbf16> to vector<32x128xf32>
    %211 = arith.mulf %174, %188 : vector<1x128xf32>
    %212 = vector.broadcast %211 : vector<1x128xf32> to vector<32x128xf32>
    %213 = arith.mulf %210, %212 : vector<32x128xf32>
    %214 = arith.addf %209, %213 : vector<32x128xf32>
    %215 = arith.extf %117 : vector<32x128xbf16> to vector<32x128xf32>
    %216 = arith.mulf %176, %188 : vector<1x128xf32>
    %217 = vector.broadcast %216 : vector<1x128xf32> to vector<32x128xf32>
    %218 = arith.mulf %215, %217 : vector<32x128xf32>
    %219 = arith.addf %214, %218 : vector<32x128xf32>
    %220 = arith.extf %133 : vector<32x128xbf16> to vector<32x128xf32>
    %221 = arith.mulf %178, %188 : vector<1x128xf32>
    %222 = vector.broadcast %221 : vector<1x128xf32> to vector<32x128xf32>
    %223 = arith.mulf %220, %222 : vector<32x128xf32>
    %224 = arith.addf %219, %223 : vector<32x128xf32>
    %225 = arith.extf %149 : vector<32x128xbf16> to vector<32x128xf32>
    %226 = arith.mulf %180, %188 : vector<1x128xf32>
    %227 = vector.broadcast %226 : vector<1x128xf32> to vector<32x128xf32>
    %228 = arith.mulf %225, %227 : vector<32x128xf32>
    %229 = arith.addf %224, %228 : vector<32x128xf32>
    %230 = tpu.concatenate %14, %20, %229 in 0 : vector<32x128xf32>, vector<32x128xf32>, vector<32x128xf32> -> vector<96x128xf32>
    %231 = arith.truncf %230 : vector<96x128xf32> to vector<96x128xbf16>
    %c0_59 = arith.constant 0 : index
    %c0_60 = arith.constant 0 : index
    %232 = vector.load %arg9[%c0_59, %c0_60] : memref<32x96xbf16, #tpu.memory_space<vmem>>, vector<32x96xbf16>
    %cst_61 = arith.constant dense<0.000000e+00> : vector<32x128xf32>
    %233 = tpu.matmul %232, %231, %cst_61 {dimension_numbers = #tpu.dot_dimension_numbers<[1], [0], [0], [1], [0, 0, 1, 1], [], []>} : vector<32x96xbf16>, vector<96x128xbf16>, vector<32x128xf32> -> vector<32x128xf32>
    %234 = vector.broadcast %2 : vector<32x1xf32> to vector<32x128xf32>
    %235 = arith.addf %233, %234 : vector<32x128xf32>
    %cst_62 = arith.constant 0.00999999977 : f32
    %236 = vector.broadcast %cst_62 : f32 to vector<32x128xf32>
    %237 = arith.mulf %236, %235 : vector<32x128xf32>
    %238 = arith.maximumf %235, %237 : vector<32x128xf32>
    %c0_63 = arith.constant 0 : index
    %c0_64 = arith.constant 0 : index
    %239 = vector.load %arg10[%c0_63, %c0_64] : memref<32x32xbf16, #tpu.memory_space<vmem>>, vector<32x32xbf16>
    %240 = arith.truncf %238 : vector<32x128xf32> to vector<32x128xbf16>
    %cst_65 = arith.constant dense<0.000000e+00> : vector<32x128xf32>
    %241 = tpu.matmul %239, %240, %cst_65 {dimension_numbers = #tpu.dot_dimension_numbers<[1], [0], [0], [1], [0, 0, 1, 1], [], []>} : vector<32x32xbf16>, vector<32x128xbf16>, vector<32x128xf32> -> vector<32x128xf32>
    %242 = vector.broadcast %3 : vector<32x1xf32> to vector<32x128xf32>
    %243 = arith.addf %241, %242 : vector<32x128xf32>
    %cst_66 = arith.constant 0.00999999977 : f32
    %244 = vector.broadcast %cst_66 : f32 to vector<32x128xf32>
    %245 = arith.mulf %244, %243 : vector<32x128xf32>
    %246 = arith.maximumf %243, %245 : vector<32x128xf32>
    %c0_67 = arith.constant 0 : index
    %c0_68 = arith.constant 0 : index
    %247 = vector.load %arg11[%c0_67, %c0_68] : memref<2x32xbf16, #tpu.memory_space<vmem>>, vector<2x32xbf16>
    %248 = arith.truncf %246 : vector<32x128xf32> to vector<32x128xbf16>
    %cst_69 = arith.constant dense<0.000000e+00> : vector<2x128xf32>
    %249 = tpu.matmul %247, %248, %cst_69 {dimension_numbers = #tpu.dot_dimension_numbers<[1], [0], [0], [1], [0, 0, 1, 1], [], []>} : vector<2x32xbf16>, vector<32x128xbf16>, vector<2x128xf32> -> vector<2x128xf32>
    %c0_70 = arith.constant 0 : index
    %c0_71 = arith.constant 0 : index
    %250 = vector.load %arg13[%c0_70, %c0_71] : memref<2x1xf32, #tpu.memory_space<vmem>>, vector<2x1xf32>
    %251 = vector.broadcast %250 : vector<2x1xf32> to vector<2x128xf32>
    %252 = arith.addf %249, %251 : vector<2x128xf32>
    %253 = tpu.iota {dimensions = array<i32: 0>} : vector<2x128xi32>
    %cst_72 = arith.constant 0.000000e+00 : f32
    %254 = vector.broadcast %cst_72 : f32 to vector<2x128xf32>
    %255 = arith.subf %254, %252 : vector<2x128xf32>
    %256 = math.exp %255 : vector<2x128xf32>
    %cst_73 = arith.constant 1.000000e+00 : f32
    %257 = vector.broadcast %cst_73 : f32 to vector<2x128xf32>
    %258 = arith.addf %257, %256 : vector<2x128xf32>
    %cst_74 = arith.constant 1.000000e+00 : f32
    %259 = vector.broadcast %cst_74 : f32 to vector<2x128xf32>
    %260 = arith.divf %259, %258 : vector<2x128xf32>
    %c0_i32 = arith.constant 0 : i32
    %261 = vector.broadcast %c0_i32 : i32 to vector<2x128xi32>
    %262 = arith.cmpi eq, %253, %261 : vector<2x128xi32>
    %cst_75 = arith.constant 0.000000e+00 : f32
    %263 = vector.broadcast %cst_75 : f32 to vector<2x128xf32>
    %264 = arith.maximumf %252, %263 : vector<2x128xf32>
    %265 = arith.select %262, %260, %264 : vector<2x128xi1>, vector<2x128xf32>
    %c0_76 = arith.constant 0 : index
    %c0_77 = arith.constant 0 : index
    %266 = vector.load %arg15[%c0_76, %c0_77] : memref<2x128xf32, #tpu.memory_space<vmem>>, vector<2x128xf32>
    tpu.vector_store %arg15[%c0_76, %c0_77], %265 {strides = array<i32>} : memref<2x128xf32, #tpu.memory_space<vmem>>, vector<2x128xf32>,
    %c0_78 = arith.constant 0 : index
    %c0_79 = arith.constant 0 : index
    %267 = vector.load %arg14[%c0_78, %c0_79] : memref<32x128xf32, #tpu.memory_space<vmem>>, vector<32x128xf32>
    tpu.vector_store %arg14[%c0_78, %c0_79], %246 {strides = array<i32>} : memref<32x128xf32, #tpu.memory_space<vmem>>, vector<32x128xf32>,
    return
  }
  func.func @transform_0(%arg0: i32) -> (i32, i32) {
    %c0_i32 = arith.constant 0 : i32
    %c0_i32_0 = arith.constant 0 : i32
    return %c0_i32, %arg0 : i32, i32
  }
  func.func @transform_1(%arg0: i32) -> (i32, i32) {
    %c0_i32 = arith.constant 0 : i32
    %c0_i32_0 = arith.constant 0 : i32
    return %c0_i32, %arg0 : i32, i32
  }
  func.func @transform_2(%arg0: i32) -> (i32, i32) {
    %c0_i32 = arith.constant 0 : i32
    %c0_i32_0 = arith.constant 0 : i32
    return %c0_i32, %arg0 : i32, i32
  }
  func.func @transform_3(%arg0: i32) -> (i32, i32) {
    %c0_i32 = arith.constant 0 : i32
    %c0_i32_0 = arith.constant 0 : i32
    %c0_i32_1 = arith.constant 0 : i32
    return %c0_i32, %c0_i32_0 : i32, i32
  }
  func.func @transform_4(%arg0: i32) -> (i32, i32) {
    %c0_i32 = arith.constant 0 : i32
    %c0_i32_0 = arith.constant 0 : i32
    %c0_i32_1 = arith.constant 0 : i32
    return %c0_i32, %c0_i32_0 : i32, i32
  }
  func.func @transform_5(%arg0: i32) -> (i32, i32) {
    %c0_i32 = arith.constant 0 : i32
    %c0_i32_0 = arith.constant 0 : i32
    %c0_i32_1 = arith.constant 0 : i32
    return %c0_i32, %c0_i32_0 : i32, i32
  }
  func.func @transform_6(%arg0: i32) -> (i32, i32) {
    %c0_i32 = arith.constant 0 : i32
    %c0_i32_0 = arith.constant 0 : i32
    %c0_i32_1 = arith.constant 0 : i32
    return %c0_i32, %c0_i32_0 : i32, i32
  }
  func.func @transform_7(%arg0: i32) -> (i32, i32) {
    %c0_i32 = arith.constant 0 : i32
    %c0_i32_0 = arith.constant 0 : i32
    %c0_i32_1 = arith.constant 0 : i32
    return %c0_i32, %c0_i32_0 : i32, i32
  }
  func.func @transform_8(%arg0: i32) -> (i32, i32) {
    %c0_i32 = arith.constant 0 : i32
    %c0_i32_0 = arith.constant 0 : i32
    %c0_i32_1 = arith.constant 0 : i32
    return %c0_i32, %c0_i32_0 : i32, i32
  }
  func.func @transform_9(%arg0: i32) -> (i32, i32) {
    %c0_i32 = arith.constant 0 : i32
    %c0_i32_0 = arith.constant 0 : i32
    %c0_i32_1 = arith.constant 0 : i32
    return %c0_i32, %c0_i32_0 : i32, i32
  }
  func.func @transform_10(%arg0: i32) -> (i32, i32) {
    %c0_i32 = arith.constant 0 : i32
    %c0_i32_0 = arith.constant 0 : i32
    %c0_i32_1 = arith.constant 0 : i32
    return %c0_i32, %c0_i32_0 : i32, i32
  }
  func.func @transform_11(%arg0: i32) -> (i32, i32) {
    %c0_i32 = arith.constant 0 : i32
    %c0_i32_0 = arith.constant 0 : i32
    %c0_i32_1 = arith.constant 0 : i32
    return %c0_i32, %c0_i32_0 : i32, i32
  }
  func.func @transform_12(%arg0: i32) -> (i32, i32) {
    %c0_i32 = arith.constant 0 : i32
    %c0_i32_0 = arith.constant 0 : i32
    %c0_i32_1 = arith.constant 0 : i32
    return %c0_i32, %c0_i32_0 : i32, i32
  }
  func.func @transform_13(%arg0: i32) -> (i32, i32) {
    %c0_i32 = arith.constant 0 : i32
    %c0_i32_0 = arith.constant 0 : i32
    return %c0_i32, %arg0 : i32, i32
  }
  func.func @transform_14(%arg0: i32) -> (i32, i32) {
    %c0_i32 = arith.constant 0 : i32
    %c0_i32_0 = arith.constant 0 : i32
    return %c0_i32, %arg0 : i32, i32
  }
}

</mosaic_0001>

<llo_original>
// kernel: tpu_custom_call.1
$region0: #{tpu_custom_call.1}
  #allocation0 [shape = 'u32[]', space=smem, size = 0x4, offset = 0x4, fixed_abs, tag = 'smem constant byte address 0x4 - core index']
  #allocation1 [shape = 'u32[144,128]{1,0:T(1,128)}', space=vmem, size = 0x12000, scoped, tag = 'internal scratch']
  %s0 = inlined_call_operand.vmem [shape: s32[8,128], index: 0, kind: input, shape index: {}]
  %s1 = inlined_call_operand.vmem [shape: s32[1,128], index: 1, kind: input, shape index: {}]
  %s2 = inlined_call_operand.vmem [shape: s32[1,128], index: 2, kind: input, shape index: {}]
  %s3 = inlined_call_operand.vmem [shape: bf16[32,56], index: 3, kind: input, shape index: {}]
  %s4 = inlined_call_operand.vmem [shape: f32[32,24], index: 4, kind: input, shape index: {}]
  %s5 = inlined_call_operand.vmem [shape: f32[32,24], index: 5, kind: input, shape index: {}]
  %s6 = inlined_call_operand.vmem [shape: bf16[32,32], index: 6, kind: input, shape index: {}]
  %s7 = inlined_call_operand.vmem [shape: bf16[32,32], index: 7, kind: input, shape index: {}]
  %s8 = inlined_call_operand.vmem [shape: bf16[32,96], index: 8, kind: input, shape index: {}]
  %s9 = inlined_call_operand.vmem [shape: bf16[32,32], index: 9, kind: input, shape index: {}]
  %s10 = inlined_call_operand.vmem [shape: bf16[2,32], index: 10, kind: input, shape index: {}]
  %s11 = inlined_call_operand.vmem [shape: f32[32,4], index: 11, kind: input, shape index: {}]
  %s12 = inlined_call_operand.vmem [shape: f32[2,1], index: 12, kind: input, shape index: {}]
  %s13 = inlined_call_operand.hbm [shape: f32[32,128], index: 13, kind: output, shape index: {0}]
  %s14 = inlined_call_operand.hbm [shape: f32[2,128], index: 14, kind: output, shape index: {1}]
  %15 = xla_tuple %s13, %s14
  %s16 = sld [smem:[#allocation0]]
  $region70: #{tpu_custom_call.1} parent=0
    _
  %s18 = ssub.s32 1, %s16
  %s19 = scalar_select 0, %s18, %s16
  $region1: #{tpu_custom_call.1} parent=0
    #allocation2 [shape = 'u8[16384]{0}', space=vmem, size = 0x4000, scoped, tag = 'output window, operand 0, single buffered']
    #allocation3 [shape = 's32[1]{0}', space=sflag, size = 0x4, scoped, tag = 'scoped memory for tpu_custom_call.1']
    #allocation4 [shape = 'u8[1024]{0}', space=vmem, size = 0x400, scoped, tag = 'output window, operand 1, single buffered']
    #allocation5 [shape = 's32[1]{0}', space=sflag, size = 0x4, scoped, tag = 'scoped memory for tpu_custom_call.1']
    %20 = vsyncpa [#allocation3], 0
    %21 = vsyncpa [#allocation5], 0
    // Predicated region
    $region2: #{tpu_custom_call.1} parent=1 // pred_check
      _
    $region3: #{tpu_custom_call.1} parent=1 // pred_check_branch
      %23 = sbr.rel (0) target = $region5
    $region4: #{tpu_custom_call.1} parent=1 // pred_region
      _
    $region5: #{tpu_custom_call.1} parent=1 // pred_fallthru
      _
    // Predicated region
    $region6: #{tpu_custom_call.1} parent=1 // pred_check
      _
    $region7: #{tpu_custom_call.1} parent=1 // pred_check_branch
      %25 = sbr.rel (0) target = $region9
    $region8: #{tpu_custom_call.1} parent=1 // pred_region
      _
    $region9: #{tpu_custom_call.1} parent=1 // pred_fallthru
      _
    // Predicated region
    $region10: #{tpu_custom_call.1} parent=1 // pred_check
      _
    $region11: #{tpu_custom_call.1} parent=1 // pred_check_branch
      %27 = sbr.rel (0) target = $region13
    $region12: #{tpu_custom_call.1} parent=1 // pred_region
      _
    $region13: #{tpu_custom_call.1} parent=1 // pred_fallthru
      _
    // Predicated region
    $region14: #{tpu_custom_call.1} parent=1 // pred_check
      _
    $region15: #{tpu_custom_call.1} parent=1 // pred_check_branch
      %29 = sbr.rel (0) target = $region17
    $region16: #{tpu_custom_call.1} parent=1 // pred_region
      _
    $region17: #{tpu_custom_call.1} parent=1 // pred_fallthru
      _
    // Predicated region
    $region18: #{tpu_custom_call.1} parent=1 // pred_check
      _
    $region19: #{tpu_custom_call.1} parent=1 // pred_check_branch
      %31 = sbr.rel (0) target = $region21
    $region20: #{tpu_custom_call.1} parent=1 // pred_region
      _
    $region21: #{tpu_custom_call.1} parent=1 // pred_fallthru
      _
    // Predicated region
    $region22: #{tpu_custom_call.1} parent=1 // pred_check
      _
    $region23: #{tpu_custom_call.1} parent=1 // pred_check_branch
      %33 = sbr.rel (0) target = $region25
    $region24: #{tpu_custom_call.1} parent=1 // pred_region
      _
    $region25: #{tpu_custom_call.1} parent=1 // pred_fallthru
      _
    // Predicated region
    $region26: #{tpu_custom_call.1} parent=1 // pred_check
      _
    $region27: #{tpu_custom_call.1} parent=1 // pred_check_branch
      %35 = sbr.rel (0) target = $region29
    $region28: #{tpu_custom_call.1} parent=1 // pred_region
      _
    $region29: #{tpu_custom_call.1} parent=1 // pred_fallthru
      _
    // Predicated region
    $region30: #{tpu_custom_call.1} parent=1 // pred_check
      _
    $region31: #{tpu_custom_call.1} parent=1 // pred_check_branch
      %37 = sbr.rel (0) target = $region33
    $region32: #{tpu_custom_call.1} parent=1 // pred_region
      _
    $region33: #{tpu_custom_call.1} parent=1 // pred_fallthru
      _
    // Predicated region
    $region34: #{tpu_custom_call.1} parent=1 // pred_check
      _
    $region35: #{tpu_custom_call.1} parent=1 // pred_check_branch
      %39 = sbr.rel (0) target = $region37
    $region36: #{tpu_custom_call.1} parent=1 // pred_region
      _
    $region37: #{tpu_custom_call.1} parent=1 // pred_fallthru
      _
    // Predicated region
    $region38: #{tpu_custom_call.1} parent=1 // pred_check
      _
    $region39: #{tpu_custom_call.1} parent=1 // pred_check_branch
      %41 = sbr.rel (0) target = $region41
    $region40: #{tpu_custom_call.1} parent=1 // pred_region
      _
    $region41: #{tpu_custom_call.1} parent=1 // pred_fallthru
      _
    // Predicated region
    $region42: #{tpu_custom_call.1} parent=1 // pred_check
      _
    $region43: #{tpu_custom_call.1} parent=1 // pred_check_branch
      %43 = sbr.rel (0) target = $region45
    $region44: #{tpu_custom_call.1} parent=1 // pred_region
      _
    $region45: #{tpu_custom_call.1} parent=1 // pred_fallthru
      _
    // Predicated region
    $region46: #{tpu_custom_call.1} parent=1 // pred_check
      _
    $region47: #{tpu_custom_call.1} parent=1 // pred_check_branch
      %45 = sbr.rel (0) target = $region49
    $region48: #{tpu_custom_call.1} parent=1 // pred_region
      _
    $region49: #{tpu_custom_call.1} parent=1 // pred_fallthru
      _
    // Predicated region
    $region50: #{tpu_custom_call.1} parent=1 // pred_check
      _
    $region51: #{tpu_custom_call.1} parent=1 // pred_check_branch
      %47 = sbr.rel (0) target = $region53
    $region52: #{tpu_custom_call.1} parent=1 // pred_region
      _
    $region53: #{tpu_custom_call.1} parent=1 // pred_fallthru
      _
    %v49 = vld [vmem:[%s11] sm:$0xff]
    %v50 = vld [vmem:[%s11 + $0x8] sm:$0xff]
    %v51 = vld [vmem:[%s11 + $0x10] sm:$0xff]
    %v52 = vld [vmem:[%s11 + $0x18] sm:$0xff]
    %v53 = vld [vmem:[%s1] sm:$0x1]
    %v54 = vld [vmem:[%s2] sm:$0x1]
    %v55 = vlaneseq
    %v56 = vshrl.u32 %v55, 7
    %v57 = vadd.s32 %v56, 8
    %v58 = vadd.s32 %v56, 16
    %v59 = vld [vmem:[%s4] sm:$0xff]
    %v60 = vld [vmem:[%s4 + $0x8] sm:$0xff]
    %v61 = vld [vmem:[%s4 + $0x10] sm:$0xff]
    %v62 = vld [vmem:[%s4 + $0x18] sm:$0xff]
    %v63 = vlaneseq
    %v64 = vshrl.u32 %v63, 7
    %v65 = vsub.s32 0, %v64
    %v66 = vrot.slane %v53, %v65
    %vm67 = vcmp.eq.s32.totalorder %v56, %v66
    %vm68 = vcmp.eq.s32.totalorder %v57, %v66
    %vm69 = vcmp.eq.s32.totalorder %v58, %v66
    %v70 = vsel %vm67, 1, 0
    %v71 = vsel %vm68, 1, 0
    %v72 = vsel %vm69, 1, 0
    %v73 = vcvt.s32.f32 %v70
    %v74 = vcvt.s32.f32 %v71
    %v75 = vcvt.s32.f32 %v72
    %vm76 = vcmask 195584
    %v78 = vsel %vm76, %v59, 0
    %v81 = vsel %vm76, %v60, 0
    %v84 = vsel %vm76, %v61, 0
    %v87 = vsel %vm76, %v62, 0
    %89 = vmatprep.subr.mxu0 0.0
    %90 = vmatpush1.msra.mxu0 %v73
    %91 = vmatprep.subr.mxu0 0.0
    %92 = vmatpush1.msra.mxu0 %v74
    %93 = vmatprep.subr.mxu0 0.0
    %94 = vmatpush1.msra.mxu0 %v75
    %95 = vmatprep.subr.mxu0 0.0
    %96 = vmatpush1.msra.mxu0 0.0
    %97 = vmatprep.subr.mxu0 0.0
    %98 = vmatpush1.msra.mxu0 0.0
    %99 = vmatprep.subr.mxu0 0.0
    %100 = vmatpush1.msra.mxu0 0.0
    %101 = vmatprep.subr.mxu0 0.0
    %102 = vmatpush1.msra.mxu0 0.0
    %103 = vmatprep.subr.mxu0 0.0
    %104 = vmatpush1.msra.mxu0 0.0
    %105 = vmatprep.subr.mxu0 0.0
    %106 = vmatpush1.msra.mxu0 0.0
    %107 = vmatprep.subr.mxu0 0.0
    %108 = vmatpush1.msra.mxu0 0.0
    %109 = vmatprep.subr.mxu0 0.0
    %110 = vmatpush1.msra.mxu0 0.0
    %111 = vmatprep.subr.mxu0 0.0
    %112 = vmatpush1.msra.mxu0 0.0
    %113 = vmatprep.subr.mxu0 0.0
    %114 = vmatpush1.msra.mxu0 0.0
    %115 = vmatprep.subr.mxu0 0.0
    %116 = vmatpush1.msra.mxu0 0.0
    %117 = vmatprep.subr.mxu0 0.0
    %118 = vmatpush1.msra.mxu0 0.0
    %119 = vmatprep.subr.mxu0 0.0
    %120 = vmatpush1.msra.mxu0 0.0
    %121 = vmatprep.subr.mxu0 0.0
    %122 = vmatpush1.msra.mxu0 0.0
    %123 = vmatprep.subr.mxu0 0.0
    %124 = vmatpush1.msra.mxu0 0.0
    %125 = vmatprep.subr.mxu0 0.0
    %126 = vmatpush1.msra.mxu0 0.0
    %127 = vmatprep.subr.mxu0 0.0
    %128 = vmatpush1.msra.mxu0 0.0
    %129 = vmatprep.subr.mxu0 0.0
    %130 = vmatpush1.msra.mxu0 0.0
    %131 = vmatprep.subr.mxu0 0.0
    %132 = vmatpush1.msra.mxu0 0.0
    %133 = vmatprep.subr.mxu0 0.0
    %134 = vmatpush1.msra.mxu0 0.0
    %135 = vmatprep.subr.mxu0 0.0
    %136 = vmatpush1.msra.mxu0 0.0
    %137 = vmatprep.subr.mxu0 0.0
    %138 = vmatpush1.msra.mxu0 0.0
    %139 = vmatprep.subr.mxu0 0.0
    %140 = vmatpush1.msra.mxu0 0.0
    %141 = vmatprep.subr.mxu0 0.0
    %142 = vmatpush1.msra.mxu0 0.0
    %143 = vmatprep.subr.mxu0 0.0
    %144 = vmatpush1.msra.mxu0 0.0
    %145 = vmatprep.subr.mxu0 0.0
    %146 = vmatpush1.msra.mxu0 0.0
    %147 = vmatprep.subr.mxu0 0.0
    %148 = vmatpush1.msra.mxu0 0.0
    %149 = vmatprep.subr.mxu0 0.0
    %150 = vmatpush1.msra.mxu0 0.0
    %151 = vmatprep.subr.mxu0 0.0
    %152 = vmatpush1.msra.mxu0 0.0
    %153 = vmatprep.mubr.f32.mxu0 0.0
    %154 = vmatmul.mubr.f32.gmra.mrb[0].mxu0 %v78
    %v155 = vpop.f32.mrb[0].mxu0
    %v156 = vadd.f32 0.0, %v155
    %v157 = vpop.f32.mrb[0].mxu0
    %158 = vmatprep.mubr.f32.mxu0 0.0
    %159 = vmatmul.mubr.f32.gmra.mrb[0].mxu0 %v81
    %v160 = vpop.f32.mrb[0].mxu0
    %v161 = vadd.f32 0.0, %v160
    %v162 = vpop.f32.mrb[0].mxu0
    %163 = vmatprep.mubr.f32.mxu0 0.0
    %164 = vmatmul.mubr.f32.gmra.mrb[0].mxu0 %v84
    %v165 = vpop.f32.mrb[0].mxu0
    %v166 = vadd.f32 0.0, %v165
    %v167 = vpop.f32.mrb[0].mxu0
    %168 = vmatprep.mubr.f32.mxu0 0.0
    %169 = vmatmul.mubr.f32.gmra.mrb[0].mxu0 %v87
    %v170 = vpop.f32.mrb[0].mxu0
    %v171 = vadd.f32 0.0, %v170
    %v172 = vpop.f32.mrb[0].mxu0
    %173 = vdwg.mxu0
    %v174 = vld [vmem:[%s5] sm:$0xff]
    %v175 = vld [vmem:[%s5 + $0x8] sm:$0xff]
    %v176 = vld [vmem:[%s5 + $0x10] sm:$0xff]
    %v177 = vld [vmem:[%s5 + $0x18] sm:$0xff]
    %v178 = vlaneseq
    %v179 = vshrl.u32 %v178, 7
    %v180 = vsub.s32 0, %v179
    %v181 = vrot.slane %v54, %v180
    %vm182 = vcmp.eq.s32.totalorder %v56, %v181
    %vm183 = vcmp.eq.s32.totalorder %v57, %v181
    %vm184 = vcmp.eq.s32.totalorder %v58, %v181
    %v185 = vsel %vm182, 1, 0
    %v186 = vsel %vm183, 1, 0
    %v187 = vsel %vm184, 1, 0
    %v188 = vcvt.s32.f32 %v185
    %v189 = vcvt.s32.f32 %v186
    %v190 = vcvt.s32.f32 %v187
    %v192 = vsel %vm76, %v174, 0
    %v195 = vsel %vm76, %v175, 0
    %v198 = vsel %vm76, %v176, 0
    %v201 = vsel %vm76, %v177, 0
    %203 = vmatprep.subr.mxu0 0.0
    %204 = vmatpush1.msra.mxu0 %v188
    %205 = vmatprep.subr.mxu0 0.0
    %206 = vmatpush1.msra.mxu0 %v189
    %207 = vmatprep.subr.mxu0 0.0
    %208 = vmatpush1.msra.mxu0 %v190
    %209 = vmatprep.subr.mxu0 0.0
    %210 = vmatpush1.msra.mxu0 0.0
    %211 = vmatprep.subr.mxu0 0.0
    %212 = vmatpush1.msra.mxu0 0.0
    %213 = vmatprep.subr.mxu0 0.0
    %214 = vmatpush1.msra.mxu0 0.0
    %215 = vmatprep.subr.mxu0 0.0
    %216 = vmatpush1.msra.mxu0 0.0
    %217 = vmatprep.subr.mxu0 0.0
    %218 = vmatpush1.msra.mxu0 0.0
    %219 = vmatprep.subr.mxu0 0.0
    %220 = vmatpush1.msra.mxu0 0.0
    %221 = vmatprep.subr.mxu0 0.0
    %222 = vmatpush1.msra.mxu0 0.0
    %223 = vmatprep.subr.mxu0 0.0
    %224 = vmatpush1.msra.mxu0 0.0
    %225 = vmatprep.subr.mxu0 0.0
    %226 = vmatpush1.msra.mxu0 0.0
    %227 = vmatprep.subr.mxu0 0.0
    %228 = vmatpush1.msra.mxu0 0.0
    %229 = vmatprep.subr.mxu0 0.0
    %230 = vmatpush1.msra.mxu0 0.0
    %231 = vmatprep.subr.mxu0 0.0
    %232 = vmatpush1.msra.mxu0 0.0
    %233 = vmatprep.subr.mxu0 0.0
    %234 = vmatpush1.msra.mxu0 0.0
    %235 = vmatprep.subr.mxu0 0.0
    %236 = vmatpush1.msra.mxu0 0.0
    %237 = vmatprep.subr.mxu0 0.0
    %238 = vmatpush1.msra.mxu0 0.0
    %239 = vmatprep.subr.mxu0 0.0
    %240 = vmatpush1.msra.mxu0 0.0
    %241 = vmatprep.subr.mxu0 0.0
    %242 = vmatpush1.msra.mxu0 0.0
    %243 = vmatprep.subr.mxu0 0.0
    %244 = vmatpush1.msra.mxu0 0.0
    %245 = vmatprep.subr.mxu0 0.0
    %246 = vmatpush1.msra.mxu0 0.0
    %247 = vmatprep.subr.mxu0 0.0
    %248 = vmatpush1.msra.mxu0 0.0
    %249 = vmatprep.subr.mxu0 0.0
    %250 = vmatpush1.msra.mxu0 0.0
    %251 = vmatprep.subr.mxu0 0.0
    %252 = vmatpush1.msra.mxu0 0.0
    %253 = vmatprep.subr.mxu0 0.0
    %254 = vmatpush1.msra.mxu0 0.0
    %255 = vmatprep.subr.mxu0 0.0
    %256 = vmatpush1.msra.mxu0 0.0
    %257 = vmatprep.subr.mxu0 0.0
    %258 = vmatpush1.msra.mxu0 0.0
    %259 = vmatprep.subr.mxu0 0.0
    %260 = vmatpush1.msra.mxu0 0.0
    %261 = vmatprep.subr.mxu0 0.0
    %262 = vmatpush1.msra.mxu0 0.0
    %263 = vmatprep.subr.mxu0 0.0
    %264 = vmatpush1.msra.mxu0 0.0
    %265 = vmatprep.subr.mxu0 0.0
    %266 = vmatpush1.msra.mxu0 0.0
    %267 = vmatprep.mubr.f32.mxu0 0.0
    %268 = vmatmul.mubr.f32.gmra.mrb[0].mxu0 %v192
    %v269 = vpop.f32.mrb[0].mxu0
    %v270 = vadd.f32 0.0, %v269
    %v271 = vpop.f32.mrb[0].mxu0
    %272 = vmatprep.mubr.f32.mxu0 0.0
    %273 = vmatmul.mubr.f32.gmra.mrb[0].mxu0 %v195
    %v274 = vpop.f32.mrb[0].mxu0
    %v275 = vadd.f32 0.0, %v274
    %v276 = vpop.f32.mrb[0].mxu0
    %277 = vmatprep.mubr.f32.mxu0 0.0
    %278 = vmatmul.mubr.f32.gmra.mrb[0].mxu0 %v198
    %v279 = vpop.f32.mrb[0].mxu0
    %v280 = vadd.f32 0.0, %v279
    %v281 = vpop.f32.mrb[0].mxu0
    %282 = vmatprep.mubr.f32.mxu0 0.0
    %283 = vmatmul.mubr.f32.gmra.mrb[0].mxu0 %v201
    %v284 = vpop.f32.mrb[0].mxu0
    %v285 = vadd.f32 0.0, %v284
    %v286 = vpop.f32.mrb[0].mxu0
    %287 = vdwg.mxu0
    %v288 = vmul.f32 %v156, %v270
    %v289 = vmul.f32 %v161, %v275
    %v290 = vmul.f32 %v166, %v280
    %v291 = vmul.f32 %v171, %v285
    %v292 = vld [vmem:[%s6] sm:$0xf]
    %v293 = vld [vmem:[%s6 + $0x4] sm:$0xf]
    %v294 = vld [vmem:[%s6 + $0x8] sm:$0xf]
    %v295 = vld [vmem:[%s6 + $0xc] sm:$0xf]
    %v296 = vpack.c.bf16 %v289, %v288
    %v297 = vpack.c.bf16 %v291, %v290
    %299 = vset.pattern.permute.xlu0 0
    %300 = vperm.xlu0 %299, %v49
    %v301 = vpop.permute.xlu0 %300
    %304 = vset.pattern.permute.xlu0 0
    %305 = vperm.xlu0 %304, %v50
    %v306 = vpop.permute.xlu0 %305
    %309 = vset.pattern.permute.xlu0 0
    %310 = vperm.xlu0 %309, %v51
    %v311 = vpop.permute.xlu0 %310
    %314 = vset.pattern.permute.xlu0 0
    %315 = vperm.xlu0 %314, %v52
    %v316 = vpop.permute.xlu0 %315
    %v322 = vunpack.c.l.b16 %v292
    %v323 = vunpack.c.l.b16 %v293
    %v324 = vunpack.c.l.b16 %v294
    %v325 = vunpack.c.l.b16 %v295
    %v326 = vpack.c.b16 %v323, %v322
    %v327 = vpack.c.b16 %v325, %v324
    %vm328 = vcmask 261120
    %v330 = vsel %vm328, %v326, 0
    %v333 = vsel %vm328, %v327, 0
    %335 = vmatprep.subr.bf16.mxu0 0
    %336 = vmatpush1.bf16.msra.mxu0 %v296
    %337 = vmatprep.subr.bf16.mxu0 0
    %338 = vmatpush1.bf16.msra.mxu0 %v297
    %339 = vmatprep.subr.bf16.mxu0 0
    %340 = vmatpush1.bf16.msra.mxu0 0
    %341 = vmatprep.subr.bf16.mxu0 0
    %342 = vmatpush1.bf16.msra.mxu0 0
    %343 = vmatprep.subr.bf16.mxu0 0
    %344 = vmatpush1.bf16.msra.mxu0 0
    %345 = vmatprep.subr.bf16.mxu0 0
    %346 = vmatpush1.bf16.msra.mxu0 0
    %347 = vmatprep.subr.bf16.mxu0 0
    %348 = vmatpush1.bf16.msra.mxu0 0
    %349 = vmatprep.subr.bf16.mxu0 0
    %350 = vmatpush1.bf16.msra.mxu0 0
    %351 = vmatprep.subr.bf16.mxu0 0
    %352 = vmatpush1.bf16.msra.mxu0 0
    %353 = vmatprep.subr.bf16.mxu0 0
    %354 = vmatpush1.bf16.msra.mxu0 0
    %355 = vmatprep.subr.bf16.mxu0 0
    %356 = vmatpush1.bf16.msra.mxu0 0
    %357 = vmatprep.subr.bf16.mxu0 0
    %358 = vmatpush1.bf16.msra.mxu0 0
    %359 = vmatprep.subr.bf16.mxu0 0
    %360 = vmatpush1.bf16.msra.mxu0 0
    %361 = vmatprep.subr.bf16.mxu0 0
    %362 = vmatpush1.bf16.msra.mxu0 0
    %363 = vmatprep.subr.bf16.mxu0 0
    %364 = vmatpush1.bf16.msra.mxu0 0
    %365 = vmatprep.subr.bf16.mxu0 0
    %366 = vmatpush1.bf16.msra.mxu0 0
    %367 = vmatprep.mubr.bf16.mxu0 0
    %368 = vmatmul.mubr.bf16.gmra.mrb[0].mxu0 %v330
    %v369 = vpop.f32.mrb[0].mxu0
    %v370 = vadd.f32 %v301, %v369
    %v371 = vpop.f32.mrb[0].mxu0
    %v372 = vpop.f32.mrb[0].mxu0
    %v373 = vadd.f32 %v306, %v372
    %v374 = vpop.f32.mrb[0].mxu0
    %375 = vmatprep.mubr.bf16.mxu0 0
    %376 = vmatmul.mubr.bf16.gmra.mrb[0].mxu0 %v333
    %v377 = vpop.f32.mrb[0].mxu0
    %v378 = vadd.f32 %v311, %v377
    %v379 = vpop.f32.mrb[0].mxu0
    %v380 = vpop.f32.mrb[0].mxu0
    %v381 = vadd.f32 %v316, %v380
    %v382 = vpop.f32.mrb[0].mxu0
    %383 = vdwg.mxu0
    %v384 = vadd.s32 %v56, 24
    %v385 = vadd.s32 %v56, 32
    %v386 = vadd.s32 %v56, 40
    %v387 = vadd.s32 %v56, 48
    %v388 = vld [vmem:[%s3] sm:$0xf]
    %v389 = vld [vmem:[%s3 + $0x4] sm:$0xf]
    %v390 = vld [vmem:[%s3 + $0x8] sm:$0xf]
    %v391 = vld [vmem:[%s3 + $0xc] sm:$0xf]
    %v392 = vld [vmem:[%s7] sm:$0xf]
    %v393 = vld [vmem:[%s7 + $0x4] sm:$0xf]
    %v394 = vld [vmem:[%s7 + $0x8] sm:$0xf]
    %v395 = vld [vmem:[%s7 + $0xc] sm:$0xf]
    %v396 = vld [vmem:[%s0] sm:$0x1]
    %v397 = vlaneseq
    %v398 = vshrl.u32 %v397, 7
    %v399 = vsub.s32 0, %v398
    %v400 = vrot.slane %v396, %v399
    %vm401 = vcmp.eq.s32.totalorder %v56, %v400
    %vm402 = vcmp.eq.s32.totalorder %v57, %v400
    %vm403 = vcmp.eq.s32.totalorder %v58, %v400
    %vm404 = vcmp.eq.s32.totalorder %v384, %v400
    %vm405 = vcmp.eq.s32.totalorder %v385, %v400
    %vm406 = vcmp.eq.s32.totalorder %v386, %v400
    %vm407 = vcmp.eq.s32.totalorder %v387, %v400
    %v408 = vsel %vm401, 1, 0
    %v409 = vsel %vm402, 1, 0
    %v410 = vsel %vm403, 1, 0
    %v411 = vsel %vm404, 1, 0
    %v412 = vsel %vm405, 1, 0
    %v413 = vsel %vm406, 1, 0
    %v414 = vsel %vm407, 1, 0
    %v415 = vcvt.s32.f32 %v408
    %v416 = vcvt.s32.f32 %v409
    %v417 = vcvt.s32.f32 %v410
    %v418 = vcvt.s32.f32 %v411
    %v419 = vcvt.s32.f32 %v412
    %v420 = vcvt.s32.f32 %v413
    %v421 = vcvt.s32.f32 %v414
    %v422 = vpack.c.bf16 %v416, %v415
    %v423 = vpack.c.bf16 %v418, %v417
    %v424 = vpack.c.bf16 %v420, %v419
    %v425 = vpack.c.bf16 %v421, %v421
    %v430 = vunpack.c.l.b16 %v388
    %v431 = vunpack.c.l.b16 %v389
    %v432 = vunpack.c.l.b16 %v390
    %v433 = vunpack.c.l.b16 %v391
    %v434 = vpack.c.b16 %v431, %v430
    %v435 = vpack.c.b16 %v433, %v432
    %vm436 = vcmask 457728
    %v438 = vsel %vm436, %v434, 0
    %v441 = vsel %vm436, %v435, 0
    %vm443 = vcmask 1043456
    %v445 = vsel %vm443, %v425, 0
    %447 = vmatprep.subr.bf16.mxu0 0
    %448 = vmatpush1.bf16.msra.mxu0 %v422
    %449 = vmatprep.subr.bf16.mxu0 0
    %450 = vmatpush1.bf16.msra.mxu0 %v423
    %451 = vmatprep.subr.bf16.mxu0 0
    %452 = vmatpush1.bf16.msra.mxu0 %v424
    %453 = vmatprep.subr.bf16.mxu0 0
    %454 = vmatpush1.bf16.msra.mxu0 %v445
    %455 = vmatprep.subr.bf16.mxu0 0
    %456 = vmatpush1.bf16.msra.mxu0 0
    %457 = vmatprep.subr.bf16.mxu0 0
    %458 = vmatpush1.bf16.msra.mxu0 0
    %459 = vmatprep.subr.bf16.mxu0 0
    %460 = vmatpush1.bf16.msra.mxu0 0
    %461 = vmatprep.subr.bf16.mxu0 0
    %462 = vmatpush1.bf16.msra.mxu0 0
    %463 = vmatprep.subr.bf16.mxu0 0
    %464 = vmatpush1.bf16.msra.mxu0 0
    %465 = vmatprep.subr.bf16.mxu0 0
    %466 = vmatpush1.bf16.msra.mxu0 0
    %467 = vmatprep.subr.bf16.mxu0 0
    %468 = vmatpush1.bf16.msra.mxu0 0
    %469 = vmatprep.subr.bf16.mxu0 0
    %470 = vmatpush1.bf16.msra.mxu0 0
    %471 = vmatprep.subr.bf16.mxu0 0
    %472 = vmatpush1.bf16.msra.mxu0 0
    %473 = vmatprep.subr.bf16.mxu0 0
    %474 = vmatpush1.bf16.msra.mxu0 0
    %475 = vmatprep.subr.bf16.mxu0 0
    %476 = vmatpush1.bf16.msra.mxu0 0
    %477 = vmatprep.subr.bf16.mxu0 0
    %478 = vmatpush1.bf16.msra.mxu0 0
    %479 = vmatprep.mubr.bf16.mxu0 0
    %480 = vmatmul.mubr.bf16.gmra.mrb[0].mxu0 %v438
    %v481 = vpop.f32.mrb[0].mxu0
    %v482 = vadd.f32 0.0, %v481
    %v483 = vpop.f32.mrb[0].mxu0
    %v484 = vpop.f32.mrb[0].mxu0
    %v485 = vadd.f32 0.0, %v484
    %v486 = vpop.f32.mrb[0].mxu0
    %487 = vmatprep.mubr.bf16.mxu0 0
    %488 = vmatmul.mubr.bf16.gmra.mrb[0].mxu0 %v441
    %v489 = vpop.f32.mrb[0].mxu0
    %v490 = vadd.f32 0.0, %v489
    %v491 = vpop.f32.mrb[0].mxu0
    %v492 = vpop.f32.mrb[0].mxu0
    %v493 = vadd.f32 0.0, %v492
    %v494 = vpop.f32.mrb[0].mxu0
    %495 = vdwg.mxu0
    %v496 = vpack.c.bf16 %v485, %v482
    %v497 = vpack.c.bf16 %v493, %v490
    %v502 = vunpack.c.l.b16 %v392
    %v503 = vunpack.c.l.b16 %v393
    %v504 = vunpack.c.l.b16 %v394
    %v505 = vunpack.c.l.b16 %v395
    %v506 = vpack.c.b16 %v503, %v502
    %v507 = vpack.c.b16 %v505, %v504
    %v509 = vsel %vm328, %v506, 0
    %v512 = vsel %vm328, %v507, 0
    %514 = vmatprep.subr.bf16.mxu0 0
    %515 = vmatpush1.bf16.msra.mxu0 %v496
    %516 = vmatprep.subr.bf16.mxu0 0
    %517 = vmatpush1.bf16.msra.mxu0 %v497
    %518 = vmatprep.subr.bf16.mxu0 0
    %519 = vmatpush1.bf16.msra.mxu0 0
    %520 = vmatprep.subr.bf16.mxu0 0
    %521 = vmatpush1.bf16.msra.mxu0 0
    %522 = vmatprep.subr.bf16.mxu0 0
    %523 = vmatpush1.bf16.msra.mxu0 0
    %524 = vmatprep.subr.bf16.mxu0 0
    %525 = vmatpush1.bf16.msra.mxu0 0
    %526 = vmatprep.subr.bf16.mxu0 0
    %527 = vmatpush1.bf16.msra.mxu0 0
    %528 = vmatprep.subr.bf16.mxu0 0
    %529 = vmatpush1.bf16.msra.mxu0 0
    %530 = vmatprep.subr.bf16.mxu0 0
    %531 = vmatpush1.bf16.msra.mxu0 0
    %532 = vmatprep.subr.bf16.mxu0 0
    %533 = vmatpush1.bf16.msra.mxu0 0
    %534 = vmatprep.subr.bf16.mxu0 0
    %535 = vmatpush1.bf16.msra.mxu0 0
    %536 = vmatprep.subr.bf16.mxu0 0
    %537 = vmatpush1.bf16.msra.mxu0 0
    %538 = vmatprep.subr.bf16.mxu0 0
    %539 = vmatpush1.bf16.msra.mxu0 0
    %540 = vmatprep.subr.bf16.mxu0 0
    %541 = vmatpush1.bf16.msra.mxu0 0
    %542 = vmatprep.subr.bf16.mxu0 0
    %543 = vmatpush1.bf16.msra.mxu0 0
    %544 = vmatprep.subr.bf16.mxu0 0
    %545 = vmatpush1.bf16.msra.mxu0 0
    %546 = vmatprep.mubr.bf16.mxu0 0
    %547 = vmatmul.mubr.bf16.gmra.mrb[0].mxu0 %v509
    %v548 = vpop.f32.mrb[0].mxu0
    %v549 = vadd.f32 %v370, %v548
    %v550 = vpop.f32.mrb[0].mxu0
    %v551 = vpop.f32.mrb[0].mxu0
    %v552 = vadd.f32 %v373, %v551
    %v553 = vpop.f32.mrb[0].mxu0
    %554 = vmatprep.mubr.bf16.mxu0 0
    %555 = vmatmul.mubr.bf16.gmra.mrb[0].mxu0 %v512
    %v556 = vpop.f32.mrb[0].mxu0
    %v557 = vadd.f32 %v378, %v556
    %v558 = vpop.f32.mrb[0].mxu0
    %v559 = vpop.f32.mrb[0].mxu0
    %v560 = vadd.f32 %v381, %v559
    %v561 = vpop.f32.mrb[0].mxu0
    %562 = vdwg.mxu0
    %v563 = vmax.f32 %v549, 0.0
    %v564 = vmax.f32 %v552, 0.0
    %v565 = vmax.f32 %v557, 0.0
    %v566 = vmax.f32 %v560, 0.0
    %567 = vset.pattern.permute.xlu0 3
    %568 = vperm.xlu0 %567, %v49
    %v569 = vpop.permute.xlu0 %568
    %571 = vset.pattern.permute.xlu0 3
    %572 = vperm.xlu0 %571, %v50
    %v573 = vpop.permute.xlu0 %572
    %575 = vset.pattern.permute.xlu0 3
    %576 = vperm.xlu0 %575, %v51
    %v577 = vpop.permute.xlu0 %576
    %579 = vset.pattern.permute.xlu0 3
    %580 = vperm.xlu0 %579, %v52
    %v581 = vpop.permute.xlu0 %580
    %v583 = vmul.f32 %v563, %v569
    %v584 = vmul.f32 %v564, %v573
    %v585 = vmul.f32 %v565, %v577
    %v586 = vmul.f32 %v566, %v581
    %v587 = vadd.f32 %v583, %v584
    %v588 = vadd.f32 %v587, %v585
    %v589 = vadd.f32 %v588, %v586
    %v590 = vrot.slane %v589, 4
    %v591 = vadd.f32 %v589, %v590
    %v592 = vrot.slane %v591, 2
    %v593 = vadd.f32 %v591, %v592
    %v594 = vrot.slane %v593, 1
    %v595 = vadd.f32 %v593, %v594
    %v596 = vld [vmem:[%s0 + $0x1] sm:$0x1]
    %v597 = vlaneseq
    %v598 = vshrl.u32 %v597, 7
    %v599 = vsub.s32 0, %v598
    %v600 = vrot.slane %v596, %v599
    %vm601 = vcmp.eq.s32.totalorder %v56, %v600
    %vm602 = vcmp.eq.s32.totalorder %v57, %v600
    %vm603 = vcmp.eq.s32.totalorder %v58, %v600
    %vm604 = vcmp.eq.s32.totalorder %v384, %v600
    %vm605 = vcmp.eq.s32.totalorder %v385, %v600
    %vm606 = vcmp.eq.s32.totalorder %v386, %v600
    %vm607 = vcmp.eq.s32.totalorder %v387, %v600
    %v608 = vsel %vm601, 1, 0
    %v609 = vsel %vm602, 1, 0
    %v610 = vsel %vm603, 1, 0
    %v611 = vsel %vm604, 1, 0
    %v612 = vsel %vm605, 1, 0
    %v613 = vsel %vm606, 1, 0
    %v614 = vsel %vm607, 1, 0
    %v615 = vcvt.s32.f32 %v608
    %v616 = vcvt.s32.f32 %v609
    %v617 = vcvt.s32.f32 %v610
    %v618 = vcvt.s32.f32 %v611
    %v619 = vcvt.s32.f32 %v612
    %v620 = vcvt.s32.f32 %v613
    %v621 = vcvt.s32.f32 %v614
    %v622 = vpack.c.bf16 %v616, %v615
    %v623 = vpack.c.bf16 %v618, %v617
    %v624 = vpack.c.bf16 %v620, %v619
    %v625 = vpack.c.bf16 %v621, %v621
    %v627 = vsel %vm443, %v625, 0
    %629 = vmatprep.subr.bf16.mxu0 0
    %630 = vmatpush1.bf16.msra.mxu0 %v622
    %631 = vmatprep.subr.bf16.mxu0 0
    %632 = vmatpush1.bf16.msra.mxu0 %v623
    %633 = vmatprep.subr.bf16.mxu0 0
    %634 = vmatpush1.bf16.msra.mxu0 %v624
    %635 = vmatprep.subr.bf16.mxu0 0
    %636 = vmatpush1.bf16.msra.mxu0 %v627
    %637 = vmatprep.subr.bf16.mxu0 0
    %638 = vmatpush1.bf16.msra.mxu0 0
    %639 = vmatprep.subr.bf16.mxu0 0
    %640 = vmatpush1.bf16.msra.mxu0 0
    %641 = vmatprep.subr.bf16.mxu0 0
    %642 = vmatpush1.bf16.msra.mxu0 0
    %643 = vmatprep.subr.bf16.mxu0 0
    %644 = vmatpush1.bf16.msra.mxu0 0
    %645 = vmatprep.subr.bf16.mxu0 0
    %646 = vmatpush1.bf16.msra.mxu0 0
    %647 = vmatprep.subr.bf16.mxu0 0
    %648 = vmatpush1.bf16.msra.mxu0 0
    %649 = vmatprep.subr.bf16.mxu0 0
    %650 = vmatpush1.bf16.msra.mxu0 0
    %651 = vmatprep.subr.bf16.mxu0 0
    %652 = vmatpush1.bf16.msra.mxu0 0
    %653 = vmatprep.subr.bf16.mxu0 0
    %654 = vmatpush1.bf16.msra.mxu0 0
    %655 = vmatprep.subr.bf16.mxu0 0
    %656 = vmatpush1.bf16.msra.mxu0 0
    %657 = vmatprep.subr.bf16.mxu0 0
    %658 = vmatpush1.bf16.msra.mxu0 0
    %659 = vmatprep.subr.bf16.mxu0 0
    %660 = vmatpush1.bf16.msra.mxu0 0
    %661 = vmatprep.mubr.bf16.mxu0 0
    %662 = vmatmul.mubr.bf16.gmra.mrb[0].mxu0 %v438
    %v663 = vpop.f32.mrb[0].mxu0
    %v664 = vadd.f32 0.0, %v663
    %v665 = vpop.f32.mrb[0].mxu0
    %v666 = vpop.f32.mrb[0].mxu0
    %v667 = vadd.f32 0.0, %v666
    %v668 = vpop.f32.mrb[0].mxu0
    %669 = vmatprep.mubr.bf16.mxu0 0
    %670 = vmatmul.mubr.bf16.gmra.mrb[0].mxu0 %v441
    %v671 = vpop.f32.mrb[0].mxu0
    %v672 = vadd.f32 0.0, %v671
    %v673 = vpop.f32.mrb[0].mxu0
    %v674 = vpop.f32.mrb[0].mxu0
    %v675 = vadd.f32 0.0, %v674
    %v676 = vpop.f32.mrb[0].mxu0
    %677 = vdwg.mxu0
    %v678 = vpack.c.bf16 %v667, %v664
    %v679 = vpack.c.bf16 %v675, %v672
    %680 = vmatprep.subr.bf16.mxu0 0
    %681 = vmatpush1.bf16.msra.mxu0 %v678
    %682 = vmatprep.subr.bf16.mxu0 0
    %683 = vmatpush1.bf16.msra.mxu0 %v679
    %684 = vmatprep.subr.bf16.mxu0 0
    %685 = vmatpush1.bf16.msra.mxu0 0
    %686 = vmatprep.subr.bf16.mxu0 0
    %687 = vmatpush1.bf16.msra.mxu0 0
    %688 = vmatprep.subr.bf16.mxu0 0
    %689 = vmatpush1.bf16.msra.mxu0 0
    %690 = vmatprep.subr.bf16.mxu0 0
    %691 = vmatpush1.bf16.msra.mxu0 0
    %692 = vmatprep.subr.bf16.mxu0 0
    %693 = vmatpush1.bf16.msra.mxu0 0
    %694 = vmatprep.subr.bf16.mxu0 0
    %695 = vmatpush1.bf16.msra.mxu0 0
    %696 = vmatprep.subr.bf16.mxu0 0
    %697 = vmatpush1.bf16.msra.mxu0 0
    %698 = vmatprep.subr.bf16.mxu0 0
    %699 = vmatpush1.bf16.msra.mxu0 0
    %700 = vmatprep.subr.bf16.mxu0 0
    %701 = vmatpush1.bf16.msra.mxu0 0
    %702 = vmatprep.subr.bf16.mxu0 0
    %703 = vmatpush1.bf16.msra.mxu0 0
    %704 = vmatprep.subr.bf16.mxu0 0
    %705 = vmatpush1.bf16.msra.mxu0 0
    %706 = vmatprep.subr.bf16.mxu0 0
    %707 = vmatpush1.bf16.msra.mxu0 0
    %708 = vmatprep.subr.bf16.mxu0 0
    %709 = vmatpush1.bf16.msra.mxu0 0
    %710 = vmatprep.subr.bf16.mxu0 0
    %711 = vmatpush1.bf16.msra.mxu0 0
    %712 = vmatprep.mubr.bf16.mxu0 0
    %713 = vmatmul.mubr.bf16.gmra.mrb[0].mxu0 %v509
    %v714 = vpop.f32.mrb[0].mxu0
    %v715 = vadd.f32 %v370, %v714
    %v716 = vpop.f32.mrb[0].mxu0
    %v717 = vpop.f32.mrb[0].mxu0
    %v718 = vadd.f32 %v373, %v717
    %v719 = vpop.f32.mrb[0].mxu0
    %720 = vmatprep.mubr.bf16.mxu0 0
    %721 = vmatmul.mubr.bf16.gmra.mrb[0].mxu0 %v512
    %v722 = vpop.f32.mrb[0].mxu0
    %v723 = vadd.f32 %v378, %v722
    %v724 = vpop.f32.mrb[0].mxu0
    %v725 = vpop.f32.mrb[0].mxu0
    %v726 = vadd.f32 %v381, %v725
    %v727 = vpop.f32.mrb[0].mxu0
    %728 = vdwg.mxu0
    %v729 = vmax.f32 %v715, 0.0
    %v730 = vmax.f32 %v718, 0.0
    %v731 = vmax.f32 %v723, 0.0
    %v732 = vmax.f32 %v726, 0.0
    %v733 = vmul.f32 %v729, %v569
    %v734 = vmul.f32 %v730, %v573
    %v735 = vmul.f32 %v731, %v577
    %v736 = vmul.f32 %v732, %v581
    %v737 = vadd.f32 %v733, %v734
    %v738 = vadd.f32 %v737, %v735
    %v739 = vadd.f32 %v738, %v736
    %v740 = vrot.slane %v739, 4
    %v741 = vadd.f32 %v739, %v740
    %v742 = vrot.slane %v741, 2
    %v743 = vadd.f32 %v741, %v742
    %v744 = vrot.slane %v743, 1
    %v745 = vadd.f32 %v743, %v744
    %v746 = vld [vmem:[%s0 + $0x2] sm:$0x1]
    %v747 = vlaneseq
    %v748 = vshrl.u32 %v747, 7
    %v749 = vsub.s32 0, %v748
    %v750 = vrot.slane %v746, %v749
    %vm751 = vcmp.eq.s32.totalorder %v56, %v750
    %vm752 = vcmp.eq.s32.totalorder %v57, %v750
    %vm753 = vcmp.eq.s32.totalorder %v58, %v750
    %vm754 = vcmp.eq.s32.totalorder %v384, %v750
    %vm755 = vcmp.eq.s32.totalorder %v385, %v750
    %vm756 = vcmp.eq.s32.totalorder %v386, %v750
    %vm757 = vcmp.eq.s32.totalorder %v387, %v750
    %v758 = vsel %vm751, 1, 0
    %v759 = vsel %vm752, 1, 0
    %v760 = vsel %vm753, 1, 0
    %v761 = vsel %vm754, 1, 0
    %v762 = vsel %vm755, 1, 0
    %v763 = vsel %vm756, 1, 0
    %v764 = vsel %vm757, 1, 0
    %v765 = vcvt.s32.f32 %v758
    %v766 = vcvt.s32.f32 %v759
    %v767 = vcvt.s32.f32 %v760
    %v768 = vcvt.s32.f32 %v761
    %v769 = vcvt.s32.f32 %v762
    %v770 = vcvt.s32.f32 %v763
    %v771 = vcvt.s32.f32 %v764
    %v772 = vpack.c.bf16 %v766, %v765
    %v773 = vpack.c.bf16 %v768, %v767
    %v774 = vpack.c.bf16 %v770, %v769
    %v775 = vpack.c.bf16 %v771, %v771
    %v777 = vsel %vm443, %v775, 0
    %779 = vmatprep.subr.bf16.mxu0 0
    %780 = vmatpush1.bf16.msra.mxu0 %v772
    %781 = vmatprep.subr.bf16.mxu0 0
    %782 = vmatpush1.bf16.msra.mxu0 %v773
    %783 = vmatprep.subr.bf16.mxu0 0
    %784 = vmatpush1.bf16.msra.mxu0 %v774
    %785 = vmatprep.subr.bf16.mxu0 0
    %786 = vmatpush1.bf16.msra.mxu0 %v777
    %787 = vmatprep.subr.bf16.mxu0 0
    %788 = vmatpush1.bf16.msra.mxu0 0
    %789 = vmatprep.subr.bf16.mxu0 0
    %790 = vmatpush1.bf16.msra.mxu0 0
    %791 = vmatprep.subr.bf16.mxu0 0
    %792 = vmatpush1.bf16.msra.mxu0 0
    %793 = vmatprep.subr.bf16.mxu0 0
    %794 = vmatpush1.bf16.msra.mxu0 0
    %795 = vmatprep.subr.bf16.mxu0 0
    %796 = vmatpush1.bf16.msra.mxu0 0
    %797 = vmatprep.subr.bf16.mxu0 0
    %798 = vmatpush1.bf16.msra.mxu0 0
    %799 = vmatprep.subr.bf16.mxu0 0
    %800 = vmatpush1.bf16.msra.mxu0 0
    %801 = vmatprep.subr.bf16.mxu0 0
    %802 = vmatpush1.bf16.msra.mxu0 0
    %803 = vmatprep.subr.bf16.mxu0 0
    %804 = vmatpush1.bf16.msra.mxu0 0
    %805 = vmatprep.subr.bf16.mxu0 0
    %806 = vmatpush1.bf16.msra.mxu0 0
    %807 = vmatprep.subr.bf16.mxu0 0
    %808 = vmatpush1.bf16.msra.mxu0 0
    %809 = vmatprep.subr.bf16.mxu0 0
    %810 = vmatpush1.bf16.msra.mxu0 0
    %811 = vmatprep.mubr.bf16.mxu0 0
    %812 = vmatmul.mubr.bf16.gmra.mrb[0].mxu0 %v438
    %v813 = vpop.f32.mrb[0].mxu0
    %v814 = vadd.f32 0.0, %v813
    %v815 = vpop.f32.mrb[0].mxu0
    %v816 = vpop.f32.mrb[0].mxu0
    %v817 = vadd.f32 0.0, %v816
    %v818 = vpop.f32.mrb[0].mxu0
    %819 = vmatprep.mubr.bf16.mxu0 0
    %820 = vmatmul.mubr.bf16.gmra.mrb[0].mxu0 %v441
    %v821 = vpop.f32.mrb[0].mxu0
    %v822 = vadd.f32 0.0, %v821
    %v823 = vpop.f32.mrb[0].mxu0
    %v824 = vpop.f32.mrb[0].mxu0
    %v825 = vadd.f32 0.0, %v824
    %v826 = vpop.f32.mrb[0].mxu0
    %827 = vdwg.mxu0
    %v828 = vpack.c.bf16 %v817, %v814
    %v829 = vpack.c.bf16 %v825, %v822
    %830 = vmatprep.subr.bf16.mxu0 0
    %831 = vmatpush1.bf16.msra.mxu0 %v828
    %832 = vmatprep.subr.bf16.mxu0 0
    %833 = vmatpush1.bf16.msra.mxu0 %v829
    %834 = vmatprep.subr.bf16.mxu0 0
    %835 = vmatpush1.bf16.msra.mxu0 0
    %836 = vmatprep.subr.bf16.mxu0 0
    %837 = vmatpush1.bf16.msra.mxu0 0
    %838 = vmatprep.subr.bf16.mxu0 0
    %839 = vmatpush1.bf16.msra.mxu0 0
    %840 = vmatprep.subr.bf16.mxu0 0
    %841 = vmatpush1.bf16.msra.mxu0 0
    %842 = vmatprep.subr.bf16.mxu0 0
    %843 = vmatpush1.bf16.msra.mxu0 0
    %844 = vmatprep.subr.bf16.mxu0 0
    %845 = vmatpush1.bf16.msra.mxu0 0
    %846 = vmatprep.subr.bf16.mxu0 0
    %847 = vmatpush1.bf16.msra.mxu0 0
    %848 = vmatprep.subr.bf16.mxu0 0
    %849 = vmatpush1.bf16.msra.mxu0 0
    %850 = vmatprep.subr.bf16.mxu0 0
    %851 = vmatpush1.bf16.msra.mxu0 0
    %852 = vmatprep.subr.bf16.mxu0 0
    %853 = vmatpush1.bf16.msra.mxu0 0
    %854 = vmatprep.subr.bf16.mxu0 0
    %855 = vmatpush1.bf16.msra.mxu0 0
    %856 = vmatprep.subr.bf16.mxu0 0
    %857 = vmatpush1.bf16.msra.mxu0 0
    %858 = vmatprep.subr.bf16.mxu0 0
    %859 = vmatpush1.bf16.msra.mxu0 0
    %860 = vmatprep.subr.bf16.mxu0 0
    %861 = vmatpush1.bf16.msra.mxu0 0
    %862 = vmatprep.mubr.bf16.mxu0 0
    %863 = vmatmul.mubr.bf16.gmra.mrb[0].mxu0 %v509
    %v864 = vpop.f32.mrb[0].mxu0
    %v865 = vadd.f32 %v370, %v864
    %v866 = vpop.f32.mrb[0].mxu0
    %v867 = vpop.f32.mrb[0].mxu0
    %v868 = vadd.f32 %v373, %v867
    %v869 = vpop.f32.mrb[0].mxu0
    %870 = vmatprep.mubr.bf16.mxu0 0
    %871 = vmatmul.mubr.bf16.gmra.mrb[0].mxu0 %v512
    %v872 = vpop.f32.mrb[0].mxu0
    %v873 = vadd.f32 %v378, %v872
    %v874 = vpop.f32.mrb[0].mxu0
    %v875 = vpop.f32.mrb[0].mxu0
    %v876 = vadd.f32 %v381, %v875
    %v877 = vpop.f32.mrb[0].mxu0
    %878 = vdwg.mxu0
    %v879 = vmax.f32 %v865, 0.0
    %v880 = vmax.f32 %v868, 0.0
    %v881 = vmax.f32 %v873, 0.0
    %v882 = vmax.f32 %v876, 0.0
    %v883 = vmul.f32 %v879, %v569
    %v884 = vmul.f32 %v880, %v573
    %v885 = vmul.f32 %v881, %v577
    %v886 = vmul.f32 %v882, %v581
    %v887 = vadd.f32 %v883, %v884
    %v888 = vadd.f32 %v887, %v885
    %v889 = vadd.f32 %v888, %v886
    %v890 = vrot.slane %v889, 4
    %v891 = vadd.f32 %v889, %v890
    %v892 = vrot.slane %v891, 2
    %v893 = vadd.f32 %v891, %v892
    %v894 = vrot.slane %v893, 1
    %v895 = vadd.f32 %v893, %v894
    %v896 = vld [vmem:[%s0 + $0x3] sm:$0x1]
    %v897 = vlaneseq
    %v898 = vshrl.u32 %v897, 7
    %v899 = vsub.s32 0, %v898
    %v900 = vrot.slane %v896, %v899
    %vm901 = vcmp.eq.s32.totalorder %v56, %v900
    %vm902 = vcmp.eq.s32.totalorder %v57, %v900
    %vm903 = vcmp.eq.s32.totalorder %v58, %v900
    %vm904 = vcmp.eq.s32.totalorder %v384, %v900
    %vm905 = vcmp.eq.s32.totalorder %v385, %v900
    %vm906 = vcmp.eq.s32.totalorder %v386, %v900
    %vm907 = vcmp.eq.s32.totalorder %v387, %v900
    %v908 = vsel %vm901, 1, 0
    %v909 = vsel %vm902, 1, 0
    %v910 = vsel %vm903, 1, 0
    %v911 = vsel %vm904, 1, 0
    %v912 = vsel %vm905, 1, 0
    %v913 = vsel %vm906, 1, 0
    %v914 = vsel %vm907, 1, 0
    %v915 = vcvt.s32.f32 %v908
    %v916 = vcvt.s32.f32 %v909
    %v917 = vcvt.s32.f32 %v910
    %v918 = vcvt.s32.f32 %v911
    %v919 = vcvt.s32.f32 %v912
    %v920 = vcvt.s32.f32 %v913
    %v921 = vcvt.s32.f32 %v914
    %v922 = vpack.c.bf16 %v916, %v915
    %v923 = vpack.c.bf16 %v918, %v917
    %v924 = vpack.c.bf16 %v920, %v919
    %v925 = vpack.c.bf16 %v921, %v921
    %v927 = vsel %vm443, %v925, 0
    %929 = vmatprep.subr.bf16.mxu0 0
    %930 = vmatpush1.bf16.msra.mxu0 %v922
    %931 = vmatprep.subr.bf16.mxu0 0
    %932 = vmatpush1.bf16.msra.mxu0 %v923
    %933 = vmatprep.subr.bf16.mxu0 0
    %934 = vmatpush1.bf16.msra.mxu0 %v924
    %935 = vmatprep.subr.bf16.mxu0 0
    %936 = vmatpush1.bf16.msra.mxu0 %v927
    %937 = vmatprep.subr.bf16.mxu0 0
    %938 = vmatpush1.bf16.msra.mxu0 0
    %939 = vmatprep.subr.bf16.mxu0 0
    %940 = vmatpush1.bf16.msra.mxu0 0
    %941 = vmatprep.subr.bf16.mxu0 0
    %942 = vmatpush1.bf16.msra.mxu0 0
    %943 = vmatprep.subr.bf16.mxu0 0
    %944 = vmatpush1.bf16.msra.mxu0 0
    %945 = vmatprep.subr.bf16.mxu0 0
    %946 = vmatpush1.bf16.msra.mxu0 0
    %947 = vmatprep.subr.bf16.mxu0 0
    %948 = vmatpush1.bf16.msra.mxu0 0
    %949 = vmatprep.subr.bf16.mxu0 0
    %950 = vmatpush1.bf16.msra.mxu0 0
    %951 = vmatprep.subr.bf16.mxu0 0
    %952 = vmatpush1.bf16.msra.mxu0 0
    %953 = vmatprep.subr.bf16.mxu0 0
    %954 = vmatpush1.bf16.msra.mxu0 0
    %955 = vmatprep.subr.bf16.mxu0 0
    %956 = vmatpush1.bf16.msra.mxu0 0
    %957 = vmatprep.subr.bf16.mxu0 0
    %958 = vmatpush1.bf16.msra.mxu0 0
    %959 = vmatprep.subr.bf16.mxu0 0
    %960 = vmatpush1.bf16.msra.mxu0 0
    %961 = vmatprep.mubr.bf16.mxu0 0
    %962 = vmatmul.mubr.bf16.gmra.mrb[0].mxu0 %v438
    %v963 = vpop.f32.mrb[0].mxu0
    %v964 = vadd.f32 0.0, %v963
    %v965 = vpop.f32.mrb[0].mxu0
    %v966 = vpop.f32.mrb[0].mxu0
    %v967 = vadd.f32 0.0, %v966
    %v968 = vpop.f32.mrb[0].mxu0
    %969 = vmatprep.mubr.bf16.mxu0 0
    %970 = vmatmul.mubr.bf16.gmra.mrb[0].mxu0 %v441
    %v971 = vpop.f32.mrb[0].mxu0
    %v972 = vadd.f32 0.0, %v971
    %v973 = vpop.f32.mrb[0].mxu0
    %v974 = vpop.f32.mrb[0].mxu0
    %v975 = vadd.f32 0.0, %v974
    %v976 = vpop.f32.mrb[0].mxu0
    %977 = vdwg.mxu0
    %v978 = vpack.c.bf16 %v967, %v964
    %v979 = vpack.c.bf16 %v975, %v972
    %980 = vmatprep.subr.bf16.mxu0 0
    %981 = vmatpush1.bf16.msra.mxu0 %v978
    %982 = vmatprep.subr.bf16.mxu0 0
    %983 = vmatpush1.bf16.msra.mxu0 %v979
    %984 = vmatprep.subr.bf16.mxu0 0
    %985 = vmatpush1.bf16.msra.mxu0 0
    %986 = vmatprep.subr.bf16.mxu0 0
    %987 = vmatpush1.bf16.msra.mxu0 0
    %988 = vmatprep.subr.bf16.mxu0 0
    %989 = vmatpush1.bf16.msra.mxu0 0
    %990 = vmatprep.subr.bf16.mxu0 0
    %991 = vmatpush1.bf16.msra.mxu0 0
    %992 = vmatprep.subr.bf16.mxu0 0
    %993 = vmatpush1.bf16.msra.mxu0 0
    %994 = vmatprep.subr.bf16.mxu0 0
    %995 = vmatpush1.bf16.msra.mxu0 0
    %996 = vmatprep.subr.bf16.mxu0 0
    %997 = vmatpush1.bf16.msra.mxu0 0
    %998 = vmatprep.subr.bf16.mxu0 0
    %999 = vmatpush1.bf16.msra.mxu0 0
    %1000 = vmatprep.subr.bf16.mxu0 0
    %1001 = vmatpush1.bf16.msra.mxu0 0
    %1002 = vmatprep.subr.bf16.mxu0 0
    %1003 = vmatpush1.bf16.msra.mxu0 0
    %1004 = vmatprep.subr.bf16.mxu0 0
    %1005 = vmatpush1.bf16.msra.mxu0 0
    %1006 = vmatprep.subr.bf16.mxu0 0
    %1007 = vmatpush1.bf16.msra.mxu0 0
    %1008 = vmatprep.subr.bf16.mxu0 0
    %1009 = vmatpush1.bf16.msra.mxu0 0
    %1010 = vmatprep.subr.bf16.mxu0 0
    %1011 = vmatpush1.bf16.msra.mxu0 0
    %1012 = vmatprep.mubr.bf16.mxu0 0
    %1013 = vmatmul.mubr.bf16.gmra.mrb[0].mxu0 %v509
    %v1014 = vpop.f32.mrb[0].mxu0
    %v1015 = vadd.f32 %v370, %v1014
    %v1016 = vpop.f32.mrb[0].mxu0
    %v1017 = vpop.f32.mrb[0].mxu0
    %v1018 = vadd.f32 %v373, %v1017
    %v1019 = vpop.f32.mrb[0].mxu0
    %1020 = vmatprep.mubr.bf16.mxu0 0
    %1021 = vmatmul.mubr.bf16.gmra.mrb[0].mxu0 %v512
    %v1022 = vpop.f32.mrb[0].mxu0
    %v1023 = vadd.f32 %v378, %v1022
    %v1024 = vpop.f32.mrb[0].mxu0
    %v1025 = vpop.f32.mrb[0].mxu0
    %v1026 = vadd.f32 %v381, %v1025
    %v1027 = vpop.f32.mrb[0].mxu0
    %1028 = vdwg.mxu0
    %v1029 = vmax.f32 %v1015, 0.0
    %v1030 = vmax.f32 %v1018, 0.0
    %v1031 = vmax.f32 %v1023, 0.0
    %v1032 = vmax.f32 %v1026, 0.0
    %v1033 = vmul.f32 %v1029, %v569
    %v1034 = vmul.f32 %v1030, %v573
    %v1035 = vmul.f32 %v1031, %v577
    %v1036 = vmul.f32 %v1032, %v581
    %v1037 = vadd.f32 %v1033, %v1034
    %v1038 = vadd.f32 %v1037, %v1035
    %v1039 = vadd.f32 %v1038, %v1036
    %v1040 = vrot.slane %v1039, 4
    %v1041 = vadd.f32 %v1039, %v1040
    %v1042 = vrot.slane %v1041, 2
    %v1043 = vadd.f32 %v1041, %v1042
    %v1044 = vrot.slane %v1043, 1
    %v1045 = vadd.f32 %v1043, %v1044
    %v1046 = vld [vmem:[%s0 + $0x4] sm:$0x1]
    %v1047 = vlaneseq
    %v1048 = vshrl.u32 %v1047, 7
    %v1049 = vsub.s32 0, %v1048
    %v1050 = vrot.slane %v1046, %v1049
    %vm1051 = vcmp.eq.s32.totalorder %v56, %v1050
    %vm1052 = vcmp.eq.s32.totalorder %v57, %v1050
    %vm1053 = vcmp.eq.s32.totalorder %v58, %v1050
    %vm1054 = vcmp.eq.s32.totalorder %v384, %v1050
    %vm1055 = vcmp.eq.s32.totalorder %v385, %v1050
    %vm1056 = vcmp.eq.s32.totalorder %v386, %v1050
    %vm1057 = vcmp.eq.s32.totalorder %v387, %v1050
    %v1058 = vsel %vm1051, 1, 0
    %v1059 = vsel %vm1052, 1, 0
    %v1060 = vsel %vm1053, 1, 0
    %v1061 = vsel %vm1054, 1, 0
    %v1062 = vsel %vm1055, 1, 0
    %v1063 = vsel %vm1056, 1, 0
    %v1064 = vsel %vm1057, 1, 0
    %v1065 = vcvt.s32.f32 %v1058
    %v1066 = vcvt.s32.f32 %v1059
    %v1067 = vcvt.s32.f32 %v1060
    %v1068 = vcvt.s32.f32 %v1061
    %v1069 = vcvt.s32.f32 %v1062
    %v1070 = vcvt.s32.f32 %v1063
    %v1071 = vcvt.s32.f32 %v1064
    %v1072 = vpack.c.bf16 %v1066, %v1065
    %v1073 = vpack.c.bf16 %v1068, %v1067
    %v1074 = vpack.c.bf16 %v1070, %v1069
    %v1075 = vpack.c.bf16 %v1071, %v1071
    %v1077 = vsel %vm443, %v1075, 0
    %1079 = vmatprep.subr.bf16.mxu0 0
    %1080 = vmatpush1.bf16.msra.mxu0 %v1072
    %1081 = vmatprep.subr.bf16.mxu0 0
    %1082 = vmatpush1.bf16.msra.mxu0 %v1073
    %1083 = vmatprep.subr.bf16.mxu0 0
    %1084 = vmatpush1.bf16.msra.mxu0 %v1074
    %1085 = vmatprep.subr.bf16.mxu0 0
    %1086 = vmatpush1.bf16.msra.mxu0 %v1077
    %1087 = vmatprep.subr.bf16.mxu0 0
    %1088 = vmatpush1.bf16.msra.mxu0 0
    %1089 = vmatprep.subr.bf16.mxu0 0
    %1090 = vmatpush1.bf16.msra.mxu0 0
    %1091 = vmatprep.subr.bf16.mxu0 0
    %1092 = vmatpush1.bf16.msra.mxu0 0
    %1093 = vmatprep.subr.bf16.mxu0 0
    %1094 = vmatpush1.bf16.msra.mxu0 0
    %1095 = vmatprep.subr.bf16.mxu0 0
    %1096 = vmatpush1.bf16.msra.mxu0 0
    %1097 = vmatprep.subr.bf16.mxu0 0
    %1098 = vmatpush1.bf16.msra.mxu0 0
    %1099 = vmatprep.subr.bf16.mxu0 0
    %1100 = vmatpush1.bf16.msra.mxu0 0
    %1101 = vmatprep.subr.bf16.mxu0 0
    %1102 = vmatpush1.bf16.msra.mxu0 0
    %1103 = vmatprep.subr.bf16.mxu0 0
    %1104 = vmatpush1.bf16.msra.mxu0 0
    %1105 = vmatprep.subr.bf16.mxu0 0
    %1106 = vmatpush1.bf16.msra.mxu0 0
    %1107 = vmatprep.subr.bf16.mxu0 0
    %1108 = vmatpush1.bf16.msra.mxu0 0
    %1109 = vmatprep.subr.bf16.mxu0 0
    %1110 = vmatpush1.bf16.msra.mxu0 0
    %1111 = vmatprep.mubr.bf16.mxu0 0
    %1112 = vmatmul.mubr.bf16.gmra.mrb[0].mxu0 %v438
    %v1113 = vpop.f32.mrb[0].mxu0
    %v1114 = vadd.f32 0.0, %v1113
    %v1115 = vpop.f32.mrb[0].mxu0
    %v1116 = vpop.f32.mrb[0].mxu0
    %v1117 = vadd.f32 0.0, %v1116
    %v1118 = vpop.f32.mrb[0].mxu0
    %1119 = vmatprep.mubr.bf16.mxu0 0
    %1120 = vmatmul.mubr.bf16.gmra.mrb[0].mxu0 %v441
    %v1121 = vpop.f32.mrb[0].mxu0
    %v1122 = vadd.f32 0.0, %v1121
    %v1123 = vpop.f32.mrb[0].mxu0
    %v1124 = vpop.f32.mrb[0].mxu0
    %v1125 = vadd.f32 0.0, %v1124
    %v1126 = vpop.f32.mrb[0].mxu0
    %1127 = vdwg.mxu0
    %v1128 = vpack.c.bf16 %v1117, %v1114
    %v1129 = vpack.c.bf16 %v1125, %v1122
    %1130 = vmatprep.subr.bf16.mxu0 0
    %1131 = vmatpush1.bf16.msra.mxu0 %v1128
    %1132 = vmatprep.subr.bf16.mxu0 0
    %1133 = vmatpush1.bf16.msra.mxu0 %v1129
    %1134 = vmatprep.subr.bf16.mxu0 0
    %1135 = vmatpush1.bf16.msra.mxu0 0
    %1136 = vmatprep.subr.bf16.mxu0 0
    %1137 = vmatpush1.bf16.msra.mxu0 0
    %1138 = vmatprep.subr.bf16.mxu0 0
    %1139 = vmatpush1.bf16.msra.mxu0 0
    %1140 = vmatprep.subr.bf16.mxu0 0
    %1141 = vmatpush1.bf16.msra.mxu0 0
    %1142 = vmatprep.subr.bf16.mxu0 0
    %1143 = vmatpush1.bf16.msra.mxu0 0
    %1144 = vmatprep.subr.bf16.mxu0 0
    %1145 = vmatpush1.bf16.msra.mxu0 0
    %1146 = vmatprep.subr.bf16.mxu0 0
    %1147 = vmatpush1.bf16.msra.mxu0 0
    %1148 = vmatprep.subr.bf16.mxu0 0
    %1149 = vmatpush1.bf16.msra.mxu0 0
    %1150 = vmatprep.subr.bf16.mxu0 0
    %1151 = vmatpush1.bf16.msra.mxu0 0
    %1152 = vmatprep.subr.bf16.mxu0 0
    %1153 = vmatpush1.bf16.msra.mxu0 0
    %1154 = vmatprep.subr.bf16.mxu0 0
    %1155 = vmatpush1.bf16.msra.mxu0 0
    %1156 = vmatprep.subr.bf16.mxu0 0
    %1157 = vmatpush1.bf16.msra.mxu0 0
    %1158 = vmatprep.subr.bf16.mxu0 0
    %1159 = vmatpush1.bf16.msra.mxu0 0
    %1160 = vmatprep.subr.bf16.mxu0 0
    %1161 = vmatpush1.bf16.msra.mxu0 0
    %1162 = vmatprep.mubr.bf16.mxu0 0
    %1163 = vmatmul.mubr.bf16.gmra.mrb[0].mxu0 %v509
    %v1164 = vpop.f32.mrb[0].mxu0
    %v1165 = vadd.f32 %v370, %v1164
    %v1166 = vpop.f32.mrb[0].mxu0
    %v1167 = vpop.f32.mrb[0].mxu0
    %v1168 = vadd.f32 %v373, %v1167
    %v1169 = vpop.f32.mrb[0].mxu0
    %1170 = vmatprep.mubr.bf16.mxu0 0
    %1171 = vmatmul.mubr.bf16.gmra.mrb[0].mxu0 %v512
    %v1172 = vpop.f32.mrb[0].mxu0
    %v1173 = vadd.f32 %v378, %v1172
    %v1174 = vpop.f32.mrb[0].mxu0
    %v1175 = vpop.f32.mrb[0].mxu0
    %v1176 = vadd.f32 %v381, %v1175
    %v1177 = vpop.f32.mrb[0].mxu0
    %1178 = vdwg.mxu0
    %v1179 = vmax.f32 %v1165, 0.0
    %v1180 = vmax.f32 %v1168, 0.0
    %v1181 = vmax.f32 %v1173, 0.0
    %v1182 = vmax.f32 %v1176, 0.0
    %v1183 = vmul.f32 %v1179, %v569
    %v1184 = vmul.f32 %v1180, %v573
    %v1185 = vmul.f32 %v1181, %v577
    %v1186 = vmul.f32 %v1182, %v581
    %v1187 = vadd.f32 %v1183, %v1184
    %v1188 = vadd.f32 %v1187, %v1185
    %v1189 = vadd.f32 %v1188, %v1186
    %v1190 = vrot.slane %v1189, 4
    %v1191 = vadd.f32 %v1189, %v1190
    %v1192 = vrot.slane %v1191, 2
    %v1193 = vadd.f32 %v1191, %v1192
    %v1194 = vrot.slane %v1193, 1
    %v1195 = vadd.f32 %v1193, %v1194
    %v1196 = vld [vmem:[%s0 + $0x5] sm:$0x1]
    %v1197 = vlaneseq
    %v1198 = vshrl.u32 %v1197, 7
    %v1199 = vsub.s32 0, %v1198
    %v1200 = vrot.slane %v1196, %v1199
    %vm1201 = vcmp.eq.s32.totalorder %v56, %v1200
    %vm1202 = vcmp.eq.s32.totalorder %v57, %v1200
    %vm1203 = vcmp.eq.s32.totalorder %v58, %v1200
    %vm1204 = vcmp.eq.s32.totalorder %v384, %v1200
    %vm1205 = vcmp.eq.s32.totalorder %v385, %v1200
    %vm1206 = vcmp.eq.s32.totalorder %v386, %v1200
    %vm1207 = vcmp.eq.s32.totalorder %v387, %v1200
    %v1208 = vsel %vm1201, 1, 0
    %v1209 = vsel %vm1202, 1, 0
    %v1210 = vsel %vm1203, 1, 0
    %v1211 = vsel %vm1204, 1, 0
    %v1212 = vsel %vm1205, 1, 0
    %v1213 = vsel %vm1206, 1, 0
    %v1214 = vsel %vm1207, 1, 0
    %v1215 = vcvt.s32.f32 %v1208
    %v1216 = vcvt.s32.f32 %v1209
    %v1217 = vcvt.s32.f32 %v1210
    %v1218 = vcvt.s32.f32 %v1211
    %v1219 = vcvt.s32.f32 %v1212
    %v1220 = vcvt.s32.f32 %v1213
    %v1221 = vcvt.s32.f32 %v1214
    %v1222 = vpack.c.bf16 %v1216, %v1215
    %v1223 = vpack.c.bf16 %v1218, %v1217
    %v1224 = vpack.c.bf16 %v1220, %v1219
    %v1225 = vpack.c.bf16 %v1221, %v1221
    %v1227 = vsel %vm443, %v1225, 0
    %1229 = vmatprep.subr.bf16.mxu0 0
    %1230 = vmatpush1.bf16.msra.mxu0 %v1222
    %1231 = vmatprep.subr.bf16.mxu0 0
    %1232 = vmatpush1.bf16.msra.mxu0 %v1223
    %1233 = vmatprep.subr.bf16.mxu0 0
    %1234 = vmatpush1.bf16.msra.mxu0 %v1224
    %1235 = vmatprep.subr.bf16.mxu0 0
    %1236 = vmatpush1.bf16.msra.mxu0 %v1227
    %1237 = vmatprep.subr.bf16.mxu0 0
    %1238 = vmatpush1.bf16.msra.mxu0 0
    %1239 = vmatprep.subr.bf16.mxu0 0
    %1240 = vmatpush1.bf16.msra.mxu0 0
    %1241 = vmatprep.subr.bf16.mxu0 0
    %1242 = vmatpush1.bf16.msra.mxu0 0
    %1243 = vmatprep.subr.bf16.mxu0 0
    %1244 = vmatpush1.bf16.msra.mxu0 0
    %1245 = vmatprep.subr.bf16.mxu0 0
    %1246 = vmatpush1.bf16.msra.mxu0 0
    %1247 = vmatprep.subr.bf16.mxu0 0
    %1248 = vmatpush1.bf16.msra.mxu0 0
    %1249 = vmatprep.subr.bf16.mxu0 0
    %1250 = vmatpush1.bf16.msra.mxu0 0
    %1251 = vmatprep.subr.bf16.mxu0 0
    %1252 = vmatpush1.bf16.msra.mxu0 0
    %1253 = vmatprep.subr.bf16.mxu0 0
    %1254 = vmatpush1.bf16.msra.mxu0 0
    %1255 = vmatprep.subr.bf16.mxu0 0
    %1256 = vmatpush1.bf16.msra.mxu0 0
    %1257 = vmatprep.subr.bf16.mxu0 0
    %1258 = vmatpush1.bf16.msra.mxu0 0
    %1259 = vmatprep.subr.bf16.mxu0 0
    %1260 = vmatpush1.bf16.msra.mxu0 0
    %1261 = vmatprep.mubr.bf16.mxu0 0
    %1262 = vmatmul.mubr.bf16.gmra.mrb[0].mxu0 %v438
    %v1263 = vpop.f32.mrb[0].mxu0
    %v1264 = vadd.f32 0.0, %v1263
    %v1265 = vpop.f32.mrb[0].mxu0
    %v1266 = vpop.f32.mrb[0].mxu0
    %v1267 = vadd.f32 0.0, %v1266
    %v1268 = vpop.f32.mrb[0].mxu0
    %1269 = vmatprep.mubr.bf16.mxu0 0
    %1270 = vmatmul.mubr.bf16.gmra.mrb[0].mxu0 %v441
    %v1271 = vpop.f32.mrb[0].mxu0
    %v1272 = vadd.f32 0.0, %v1271
    %v1273 = vpop.f32.mrb[0].mxu0
    %v1274 = vpop.f32.mrb[0].mxu0
    %v1275 = vadd.f32 0.0, %v1274
    %v1276 = vpop.f32.mrb[0].mxu0
    %1277 = vdwg.mxu0
    %v1278 = vpack.c.bf16 %v1267, %v1264
    %v1279 = vpack.c.bf16 %v1275, %v1272
    %1280 = vmatprep.subr.bf16.mxu0 0
    %1281 = vmatpush1.bf16.msra.mxu0 %v1278
    %1282 = vmatprep.subr.bf16.mxu0 0
    %1283 = vmatpush1.bf16.msra.mxu0 %v1279
    %1284 = vmatprep.subr.bf16.mxu0 0
    %1285 = vmatpush1.bf16.msra.mxu0 0
    %1286 = vmatprep.subr.bf16.mxu0 0
    %1287 = vmatpush1.bf16.msra.mxu0 0
    %1288 = vmatprep.subr.bf16.mxu0 0
    %1289 = vmatpush1.bf16.msra.mxu0 0
    %1290 = vmatprep.subr.bf16.mxu0 0
    %1291 = vmatpush1.bf16.msra.mxu0 0
    %1292 = vmatprep.subr.bf16.mxu0 0
    %1293 = vmatpush1.bf16.msra.mxu0 0
    %1294 = vmatprep.subr.bf16.mxu0 0
    %1295 = vmatpush1.bf16.msra.mxu0 0
    %1296 = vmatprep.subr.bf16.mxu0 0
    %1297 = vmatpush1.bf16.msra.mxu0 0
    %1298 = vmatprep.subr.bf16.mxu0 0
    %1299 = vmatpush1.bf16.msra.mxu0 0
    %1300 = vmatprep.subr.bf16.mxu0 0
    %1301 = vmatpush1.bf16.msra.mxu0 0
    %1302 = vmatprep.subr.bf16.mxu0 0
    %1303 = vmatpush1.bf16.msra.mxu0 0
    %1304 = vmatprep.subr.bf16.mxu0 0
    %1305 = vmatpush1.bf16.msra.mxu0 0
    %1306 = vmatprep.subr.bf16.mxu0 0
    %1307 = vmatpush1.bf16.msra.mxu0 0
    %1308 = vmatprep.subr.bf16.mxu0 0
    %1309 = vmatpush1.bf16.msra.mxu0 0
    %1310 = vmatprep.subr.bf16.mxu0 0
    %1311 = vmatpush1.bf16.msra.mxu0 0
    %1312 = vmatprep.mubr.bf16.mxu0 0
    %1313 = vmatmul.mubr.bf16.gmra.mrb[0].mxu0 %v509
    %v1314 = vpop.f32.mrb[0].mxu0
    %v1315 = vadd.f32 %v370, %v1314
    %v1316 = vpop.f32.mrb[0].mxu0
    %v1317 = vpop.f32.mrb[0].mxu0
    %v1318 = vadd.f32 %v373, %v1317
    %v1319 = vpop.f32.mrb[0].mxu0
    %1320 = vmatprep.mubr.bf16.mxu0 0
    %1321 = vmatmul.mubr.bf16.gmra.mrb[0].mxu0 %v512
    %v1322 = vpop.f32.mrb[0].mxu0
    %v1323 = vadd.f32 %v378, %v1322
    %v1324 = vpop.f32.mrb[0].mxu0
    %v1325 = vpop.f32.mrb[0].mxu0
    %v1326 = vadd.f32 %v381, %v1325
    %v1327 = vpop.f32.mrb[0].mxu0
    %1328 = vdwg.mxu0
    %v1329 = vmax.f32 %v1315, 0.0
    %v1330 = vmax.f32 %v1318, 0.0
    %v1331 = vmax.f32 %v1323, 0.0
    %v1332 = vmax.f32 %v1326, 0.0
    %v1333 = vmul.f32 %v1329, %v569
    %v1334 = vmul.f32 %v1330, %v573
    %v1335 = vmul.f32 %v1331, %v577
    %v1336 = vmul.f32 %v1332, %v581
    %v1337 = vadd.f32 %v1333, %v1334
    %v1338 = vadd.f32 %v1337, %v1335
    %v1339 = vadd.f32 %v1338, %v1336
    %v1340 = vrot.slane %v1339, 4
    %v1341 = vadd.f32 %v1339, %v1340
    %v1342 = vrot.slane %v1341, 2
    %v1343 = vadd.f32 %v1341, %v1342
    %v1344 = vrot.slane %v1343, 1
    %v1345 = vadd.f32 %v1343, %v1344
    %v1346 = vld [vmem:[%s0 + $0x6] sm:$0x1]
    %v1347 = vlaneseq
    %v1348 = vshrl.u32 %v1347, 7
    %v1349 = vsub.s32 0, %v1348
    %v1350 = vrot.slane %v1346, %v1349
    %vm1351 = vcmp.eq.s32.totalorder %v56, %v1350
    %vm1352 = vcmp.eq.s32.totalorder %v57, %v1350
    %vm1353 = vcmp.eq.s32.totalorder %v58, %v1350
    %vm1354 = vcmp.eq.s32.totalorder %v384, %v1350
    %vm1355 = vcmp.eq.s32.totalorder %v385, %v1350
    %vm1356 = vcmp.eq.s32.totalorder %v386, %v1350
    %vm1357 = vcmp.eq.s32.totalorder %v387, %v1350
    %v1358 = vsel %vm1351, 1, 0
    %v1359 = vsel %vm1352, 1, 0
    %v1360 = vsel %vm1353, 1, 0
    %v1361 = vsel %vm1354, 1, 0
    %v1362 = vsel %vm1355, 1, 0
    %v1363 = vsel %vm1356, 1, 0
    %v1364 = vsel %vm1357, 1, 0
    %v1365 = vcvt.s32.f32 %v1358
    %v1366 = vcvt.s32.f32 %v1359
    %v1367 = vcvt.s32.f32 %v1360
    %v1368 = vcvt.s32.f32 %v1361
    %v1369 = vcvt.s32.f32 %v1362
    %v1370 = vcvt.s32.f32 %v1363
    %v1371 = vcvt.s32.f32 %v1364
    %v1372 = vpack.c.bf16 %v1366, %v1365
    %v1373 = vpack.c.bf16 %v1368, %v1367
    %v1374 = vpack.c.bf16 %v1370, %v1369
    %v1375 = vpack.c.bf16 %v1371, %v1371
    %v1377 = vsel %vm443, %v1375, 0
    %1379 = vmatprep.subr.bf16.mxu0 0
    %1380 = vmatpush1.bf16.msra.mxu0 %v1372
    %1381 = vmatprep.subr.bf16.mxu0 0
    %1382 = vmatpush1.bf16.msra.mxu0 %v1373
    %1383 = vmatprep.subr.bf16.mxu0 0
    %1384 = vmatpush1.bf16.msra.mxu0 %v1374
    %1385 = vmatprep.subr.bf16.mxu0 0
    %1386 = vmatpush1.bf16.msra.mxu0 %v1377
    %1387 = vmatprep.subr.bf16.mxu0 0
    %1388 = vmatpush1.bf16.msra.mxu0 0
    %1389 = vmatprep.subr.bf16.mxu0 0
    %1390 = vmatpush1.bf16.msra.mxu0 0
    %1391 = vmatprep.subr.bf16.mxu0 0
    %1392 = vmatpush1.bf16.msra.mxu0 0
    %1393 = vmatprep.subr.bf16.mxu0 0
    %1394 = vmatpush1.bf16.msra.mxu0 0
    %1395 = vmatprep.subr.bf16.mxu0 0
    %1396 = vmatpush1.bf16.msra.mxu0 0
    %1397 = vmatprep.subr.bf16.mxu0 0
    %1398 = vmatpush1.bf16.msra.mxu0 0
    %1399 = vmatprep.subr.bf16.mxu0 0
    %1400 = vmatpush1.bf16.msra.mxu0 0
    %1401 = vmatprep.subr.bf16.mxu0 0
    %1402 = vmatpush1.bf16.msra.mxu0 0
    %1403 = vmatprep.subr.bf16.mxu0 0
    %1404 = vmatpush1.bf16.msra.mxu0 0
    %1405 = vmatprep.subr.bf16.mxu0 0
    %1406 = vmatpush1.bf16.msra.mxu0 0
    %1407 = vmatprep.subr.bf16.mxu0 0
    %1408 = vmatpush1.bf16.msra.mxu0 0
    %1409 = vmatprep.subr.bf16.mxu0 0
    %1410 = vmatpush1.bf16.msra.mxu0 0
    %1411 = vmatprep.mubr.bf16.mxu0 0
    %1412 = vmatmul.mubr.bf16.gmra.mrb[0].mxu0 %v438
    %v1413 = vpop.f32.mrb[0].mxu0
    %v1414 = vadd.f32 0.0, %v1413
    %v1415 = vpop.f32.mrb[0].mxu0
    %v1416 = vpop.f32.mrb[0].mxu0
    %v1417 = vadd.f32 0.0, %v1416
    %v1418 = vpop.f32.mrb[0].mxu0
    %1419 = vmatprep.mubr.bf16.mxu0 0
    %1420 = vmatmul.mubr.bf16.gmra.mrb[0].mxu0 %v441
    %v1421 = vpop.f32.mrb[0].mxu0
    %v1422 = vadd.f32 0.0, %v1421
    %v1423 = vpop.f32.mrb[0].mxu0
    %v1424 = vpop.f32.mrb[0].mxu0
    %v1425 = vadd.f32 0.0, %v1424
    %v1426 = vpop.f32.mrb[0].mxu0
    %1427 = vdwg.mxu0
    %v1428 = vpack.c.bf16 %v1417, %v1414
    %v1429 = vpack.c.bf16 %v1425, %v1422
    %1430 = vmatprep.subr.bf16.mxu0 0
    %1431 = vmatpush1.bf16.msra.mxu0 %v1428
    %1432 = vmatprep.subr.bf16.mxu0 0
    %1433 = vmatpush1.bf16.msra.mxu0 %v1429
    %1434 = vmatprep.subr.bf16.mxu0 0
    %1435 = vmatpush1.bf16.msra.mxu0 0
    %1436 = vmatprep.subr.bf16.mxu0 0
    %1437 = vmatpush1.bf16.msra.mxu0 0
    %1438 = vmatprep.subr.bf16.mxu0 0
    %1439 = vmatpush1.bf16.msra.mxu0 0
    %1440 = vmatprep.subr.bf16.mxu0 0
    %1441 = vmatpush1.bf16.msra.mxu0 0
    %1442 = vmatprep.subr.bf16.mxu0 0
    %1443 = vmatpush1.bf16.msra.mxu0 0
    %1444 = vmatprep.subr.bf16.mxu0 0
    %1445 = vmatpush1.bf16.msra.mxu0 0
    %1446 = vmatprep.subr.bf16.mxu0 0
    %1447 = vmatpush1.bf16.msra.mxu0 0
    %1448 = vmatprep.subr.bf16.mxu0 0
    %1449 = vmatpush1.bf16.msra.mxu0 0
    %1450 = vmatprep.subr.bf16.mxu0 0
    %1451 = vmatpush1.bf16.msra.mxu0 0
    %1452 = vmatprep.subr.bf16.mxu0 0
    %1453 = vmatpush1.bf16.msra.mxu0 0
    %1454 = vmatprep.subr.bf16.mxu0 0
    %1455 = vmatpush1.bf16.msra.mxu0 0
    %1456 = vmatprep.subr.bf16.mxu0 0
    %1457 = vmatpush1.bf16.msra.mxu0 0
    %1458 = vmatprep.subr.bf16.mxu0 0
    %1459 = vmatpush1.bf16.msra.mxu0 0
    %1460 = vmatprep.subr.bf16.mxu0 0
    %1461 = vmatpush1.bf16.msra.mxu0 0
    %1462 = vmatprep.mubr.bf16.mxu0 0
    %1463 = vmatmul.mubr.bf16.gmra.mrb[0].mxu0 %v509
    %v1464 = vpop.f32.mrb[0].mxu0
    %v1465 = vadd.f32 %v370, %v1464
    %v1466 = vpop.f32.mrb[0].mxu0
    %v1467 = vpop.f32.mrb[0].mxu0
    %v1468 = vadd.f32 %v373, %v1467
    %v1469 = vpop.f32.mrb[0].mxu0
    %1470 = vmatprep.mubr.bf16.mxu0 0
    %1471 = vmatmul.mubr.bf16.gmra.mrb[0].mxu0 %v512
    %v1472 = vpop.f32.mrb[0].mxu0
    %v1473 = vadd.f32 %v378, %v1472
    %v1474 = vpop.f32.mrb[0].mxu0
    %v1475 = vpop.f32.mrb[0].mxu0
    %v1476 = vadd.f32 %v381, %v1475
    %v1477 = vpop.f32.mrb[0].mxu0
    %1478 = vdwg.mxu0
    %v1479 = vmax.f32 %v1465, 0.0
    %v1480 = vmax.f32 %v1468, 0.0
    %v1481 = vmax.f32 %v1473, 0.0
    %v1482 = vmax.f32 %v1476, 0.0
    %v1483 = vmul.f32 %v1479, %v569
    %v1484 = vmul.f32 %v1480, %v573
    %v1485 = vmul.f32 %v1481, %v577
    %v1486 = vmul.f32 %v1482, %v581
    %v1487 = vadd.f32 %v1483, %v1484
    %v1488 = vadd.f32 %v1487, %v1485
    %v1489 = vadd.f32 %v1488, %v1486
    %v1490 = vrot.slane %v1489, 4
    %v1491 = vadd.f32 %v1489, %v1490
    %v1492 = vrot.slane %v1491, 2
    %v1493 = vadd.f32 %v1491, %v1492
    %v1494 = vrot.slane %v1493, 1
    %v1495 = vadd.f32 %v1493, %v1494
    %v1496 = vld [vmem:[%s0 + $0x7] sm:$0x1]
    %v1497 = vlaneseq
    %v1498 = vshrl.u32 %v1497, 7
    %v1499 = vsub.s32 0, %v1498
    %v1500 = vrot.slane %v1496, %v1499
    %vm1501 = vcmp.eq.s32.totalorder %v56, %v1500
    %vm1502 = vcmp.eq.s32.totalorder %v57, %v1500
    %vm1503 = vcmp.eq.s32.totalorder %v58, %v1500
    %vm1504 = vcmp.eq.s32.totalorder %v384, %v1500
    %vm1505 = vcmp.eq.s32.totalorder %v385, %v1500
    %vm1506 = vcmp.eq.s32.totalorder %v386, %v1500
    %vm1507 = vcmp.eq.s32.totalorder %v387, %v1500
    %v1508 = vsel %vm1501, 1, 0
    %v1509 = vsel %vm1502, 1, 0
    %v1510 = vsel %vm1503, 1, 0
    %v1511 = vsel %vm1504, 1, 0
    %v1512 = vsel %vm1505, 1, 0
    %v1513 = vsel %vm1506, 1, 0
    %v1514 = vsel %vm1507, 1, 0
    %v1515 = vcvt.s32.f32 %v1508
    %v1516 = vcvt.s32.f32 %v1509
    %v1517 = vcvt.s32.f32 %v1510
    %v1518 = vcvt.s32.f32 %v1511
    %v1519 = vcvt.s32.f32 %v1512
    %v1520 = vcvt.s32.f32 %v1513
    %v1521 = vcvt.s32.f32 %v1514
    %v1522 = vpack.c.bf16 %v1516, %v1515
    %v1523 = vpack.c.bf16 %v1518, %v1517
    %v1524 = vpack.c.bf16 %v1520, %v1519
    %v1525 = vpack.c.bf16 %v1521, %v1521
    %v1527 = vsel %vm443, %v1525, 0
    %1529 = vmatprep.subr.bf16.mxu0 0
    %1530 = vmatpush1.bf16.msra.mxu0 %v1522
    %1531 = vmatprep.subr.bf16.mxu0 0
    %1532 = vmatpush1.bf16.msra.mxu0 %v1523
    %1533 = vmatprep.subr.bf16.mxu0 0
    %1534 = vmatpush1.bf16.msra.mxu0 %v1524
    %1535 = vmatprep.subr.bf16.mxu0 0
    %1536 = vmatpush1.bf16.msra.mxu0 %v1527
    %1537 = vmatprep.subr.bf16.mxu0 0
    %1538 = vmatpush1.bf16.msra.mxu0 0
    %1539 = vmatprep.subr.bf16.mxu0 0
    %1540 = vmatpush1.bf16.msra.mxu0 0
    %1541 = vmatprep.subr.bf16.mxu0 0
    %1542 = vmatpush1.bf16.msra.mxu0 0
    %1543 = vmatprep.subr.bf16.mxu0 0
    %1544 = vmatpush1.bf16.msra.mxu0 0
    %1545 = vmatprep.subr.bf16.mxu0 0
    %1546 = vmatpush1.bf16.msra.mxu0 0
    %1547 = vmatprep.subr.bf16.mxu0 0
    %1548 = vmatpush1.bf16.msra.mxu0 0
    %1549 = vmatprep.subr.bf16.mxu0 0
    %1550 = vmatpush1.bf16.msra.mxu0 0
    %1551 = vmatprep.subr.bf16.mxu0 0
    %1552 = vmatpush1.bf16.msra.mxu0 0
    %1553 = vmatprep.subr.bf16.mxu0 0
    %1554 = vmatpush1.bf16.msra.mxu0 0
    %1555 = vmatprep.subr.bf16.mxu0 0
    %1556 = vmatpush1.bf16.msra.mxu0 0
    %1557 = vmatprep.subr.bf16.mxu0 0
    %1558 = vmatpush1.bf16.msra.mxu0 0
    %1559 = vmatprep.subr.bf16.mxu0 0
    %1560 = vmatpush1.bf16.msra.mxu0 0
    %1561 = vmatprep.mubr.bf16.mxu0 0
    %1562 = vmatmul.mubr.bf16.gmra.mrb[0].mxu0 %v438
    %v1563 = vpop.f32.mrb[0].mxu0
    %v1564 = vadd.f32 0.0, %v1563
    %v1565 = vpop.f32.mrb[0].mxu0
    %v1566 = vpop.f32.mrb[0].mxu0
    %v1567 = vadd.f32 0.0, %v1566
    %v1568 = vpop.f32.mrb[0].mxu0
    %1569 = vmatprep.mubr.bf16.mxu0 0
    %1570 = vmatmul.mubr.bf16.gmra.mrb[0].mxu0 %v441
    %v1571 = vpop.f32.mrb[0].mxu0
    %v1572 = vadd.f32 0.0, %v1571
    %v1573 = vpop.f32.mrb[0].mxu0
    %v1574 = vpop.f32.mrb[0].mxu0
    %v1575 = vadd.f32 0.0, %v1574
    %v1576 = vpop.f32.mrb[0].mxu0
    %1577 = vdwg.mxu0
    %v1578 = vpack.c.bf16 %v1567, %v1564
    %v1579 = vpack.c.bf16 %v1575, %v1572
    %1580 = vmatprep.subr.bf16.mxu0 0
    %1581 = vmatpush1.bf16.msra.mxu0 %v1578
    %1582 = vmatprep.subr.bf16.mxu0 0
    %1583 = vmatpush1.bf16.msra.mxu0 %v1579
    %1584 = vmatprep.subr.bf16.mxu0 0
    %1585 = vmatpush1.bf16.msra.mxu0 0
    %1586 = vmatprep.subr.bf16.mxu0 0
    %1587 = vmatpush1.bf16.msra.mxu0 0
    %1588 = vmatprep.subr.bf16.mxu0 0
    %1589 = vmatpush1.bf16.msra.mxu0 0
    %1590 = vmatprep.subr.bf16.mxu0 0
    %1591 = vmatpush1.bf16.msra.mxu0 0
    %1592 = vmatprep.subr.bf16.mxu0 0
    %1593 = vmatpush1.bf16.msra.mxu0 0
    %1594 = vmatprep.subr.bf16.mxu0 0
    %1595 = vmatpush1.bf16.msra.mxu0 0
    %1596 = vmatprep.subr.bf16.mxu0 0
    %1597 = vmatpush1.bf16.msra.mxu0 0
    %1598 = vmatprep.subr.bf16.mxu0 0
    %1599 = vmatpush1.bf16.msra.mxu0 0
    %1600 = vmatprep.subr.bf16.mxu0 0
    %1601 = vmatpush1.bf16.msra.mxu0 0
    %1602 = vmatprep.subr.bf16.mxu0 0
    %1603 = vmatpush1.bf16.msra.mxu0 0
    %1604 = vmatprep.subr.bf16.mxu0 0
    %1605 = vmatpush1.bf16.msra.mxu0 0
    %1606 = vmatprep.subr.bf16.mxu0 0
    %1607 = vmatpush1.bf16.msra.mxu0 0
    %1608 = vmatprep.subr.bf16.mxu0 0
    %1609 = vmatpush1.bf16.msra.mxu0 0
    %1610 = vmatprep.subr.bf16.mxu0 0
    %1611 = vmatpush1.bf16.msra.mxu0 0
    %1612 = vmatprep.mubr.bf16.mxu0 0
    %1613 = vmatmul.mubr.bf16.gmra.mrb[0].mxu0 %v509
    %v1614 = vpop.f32.mrb[0].mxu0
    %v1615 = vadd.f32 %v370, %v1614
    %v1616 = vpop.f32.mrb[0].mxu0
    %v1617 = vpop.f32.mrb[0].mxu0
    %v1618 = vadd.f32 %v373, %v1617
    %v1619 = vpop.f32.mrb[0].mxu0
    %1620 = vmatprep.mubr.bf16.mxu0 0
    %1621 = vmatmul.mubr.bf16.gmra.mrb[0].mxu0 %v512
    %v1622 = vpop.f32.mrb[0].mxu0
    %v1623 = vadd.f32 %v378, %v1622
    %v1624 = vpop.f32.mrb[0].mxu0
    %v1625 = vpop.f32.mrb[0].mxu0
    %v1626 = vadd.f32 %v381, %v1625
    %v1627 = vpop.f32.mrb[0].mxu0
    %1628 = vdwg.mxu0
    %v1629 = vmax.f32 %v1615, 0.0
    %v1630 = vmax.f32 %v1618, 0.0
    %v1631 = vmax.f32 %v1623, 0.0
    %v1632 = vmax.f32 %v1626, 0.0
    %v1633 = vmul.f32 %v1629, %v569
    %v1634 = vmul.f32 %v1630, %v573
    %v1635 = vmul.f32 %v1631, %v577
    %v1636 = vmul.f32 %v1632, %v581
    %v1637 = vadd.f32 %v1633, %v1634
    %v1638 = vadd.f32 %v1637, %v1635
    %v1639 = vadd.f32 %v1638, %v1636
    %v1640 = vrot.slane %v1639, 4
    %v1641 = vadd.f32 %v1639, %v1640
    %v1642 = vrot.slane %v1641, 2
    %v1643 = vadd.f32 %v1641, %v1642
    %v1644 = vrot.slane %v1643, 1
    %v1645 = vadd.f32 %v1643, %v1644
    %v1646 = vmax.f32 %v595, %v745
    %v1647 = vmax.f32 %v1646, %v895
    %v1648 = vmax.f32 %v1647, %v1045
    %v1649 = vmax.f32 %v1648, %v1195
    %v1650 = vmax.f32 %v1649, %v1345
    %v1651 = vmax.f32 %v1650, %v1495
    %v1652 = vmax.f32 %v1651, %v1645
    %v1653 = vsub.f32 %v595, %v1652
    %v1654 = vmul.f32 %v1653, 1.442695
    %v1655 = vpow.pop %v1654
    %v1656 = vsub.f32 %v745, %v1652
    %v1657 = vmul.f32 %v1656, 1.442695
    %v1658 = vpow.pop %v1657
    %v1659 = vsub.f32 %v895, %v1652
    %v1660 = vmul.f32 %v1659, 1.442695
    %v1661 = vpow.pop %v1660
    %v1662 = vsub.f32 %v1045, %v1652
    %v1663 = vmul.f32 %v1662, 1.442695
    %v1664 = vpow.pop %v1663
    %v1665 = vsub.f32 %v1195, %v1652
    %v1666 = vmul.f32 %v1665, 1.442695
    %v1667 = vpow.pop %v1666
    %v1668 = vsub.f32 %v1345, %v1652
    %v1669 = vmul.f32 %v1668, 1.442695
    %v1670 = vpow.pop %v1669
    %v1671 = vsub.f32 %v1495, %v1652
    %v1672 = vmul.f32 %v1671, 1.442695
    %v1673 = vpow.pop %v1672
    %v1674 = vsub.f32 %v1645, %v1652
    %v1675 = vmul.f32 %v1674, 1.442695
    %v1676 = vpow.pop %v1675
    %v1677 = vadd.f32 %v1655, %v1658
    %v1678 = vadd.f32 %v1677, %v1661
    %v1679 = vadd.f32 %v1678, %v1664
    %v1680 = vadd.f32 %v1679, %v1667
    %v1681 = vadd.f32 %v1680, %v1670
    %v1682 = vadd.f32 %v1681, %v1673
    %v1683 = vadd.f32 %v1682, %v1676
    %v1684 = vrcp.pop %v1683
    %v1685 = vunpack.c.l.bf16 %v496
    %v1686 = vunpack.c.h.bf16 %v496
    %v1687 = vunpack.c.l.bf16 %v497
    %v1688 = vunpack.c.h.bf16 %v497
    %v1689 = vmul.f32 %v1655, %v1684
    %v1690 = vmul.f32 %v1685, %v1689
    %v1691 = vmul.f32 %v1686, %v1689
    %v1692 = vmul.f32 %v1687, %v1689
    %v1693 = vmul.f32 %v1688, %v1689
    %v1694 = vadd.f32 %v1690, 0.0
    %v1695 = vadd.f32 %v1691, 0.0
    %v1696 = vadd.f32 %v1692, 0.0
    %v1697 = vadd.f32 %v1693, 0.0
    %v1698 = vunpack.c.l.bf16 %v678
    %v1699 = vunpack.c.h.bf16 %v678
    %v1700 = vunpack.c.l.bf16 %v679
    %v1701 = vunpack.c.h.bf16 %v679
    %v1702 = vmul.f32 %v1658, %v1684
    %v1703 = vmul.f32 %v1698, %v1702
    %v1704 = vmul.f32 %v1699, %v1702
    %v1705 = vmul.f32 %v1700, %v1702
    %v1706 = vmul.f32 %v1701, %v1702
    %v1707 = vadd.f32 %v1694, %v1703
    %v1708 = vadd.f32 %v1695, %v1704
    %v1709 = vadd.f32 %v1696, %v1705
    %v1710 = vadd.f32 %v1697, %v1706
    %v1711 = vunpack.c.l.bf16 %v828
    %v1712 = vunpack.c.h.bf16 %v828
    %v1713 = vunpack.c.l.bf16 %v829
    %v1714 = vunpack.c.h.bf16 %v829
    %v1715 = vmul.f32 %v1661, %v1684
    %v1716 = vmul.f32 %v1711, %v1715
    %v1717 = vmul.f32 %v1712, %v1715
    %v1718 = vmul.f32 %v1713, %v1715
    %v1719 = vmul.f32 %v1714, %v1715
    %v1720 = vadd.f32 %v1707, %v1716
    %v1721 = vadd.f32 %v1708, %v1717
    %v1722 = vadd.f32 %v1709, %v1718
    %v1723 = vadd.f32 %v1710, %v1719
    %v1724 = vunpack.c.l.bf16 %v978
    %v1725 = vunpack.c.h.bf16 %v978
    %v1726 = vunpack.c.l.bf16 %v979
    %v1727 = vunpack.c.h.bf16 %v979
    %v1728 = vmul.f32 %v1664, %v1684
    %v1729 = vmul.f32 %v1724, %v1728
    %v1730 = vmul.f32 %v1725, %v1728
    %v1731 = vmul.f32 %v1726, %v1728
    %v1732 = vmul.f32 %v1727, %v1728
    %v1733 = vadd.f32 %v1720, %v1729
    %v1734 = vadd.f32 %v1721, %v1730
    %v1735 = vadd.f32 %v1722, %v1731
    %v1736 = vadd.f32 %v1723, %v1732
    %v1737 = vunpack.c.l.bf16 %v1128
    %v1738 = vunpack.c.h.bf16 %v1128
    %v1739 = vunpack.c.l.bf16 %v1129
    %v1740 = vunpack.c.h.bf16 %v1129
    %v1741 = vmul.f32 %v1667, %v1684
    %v1742 = vmul.f32 %v1737, %v1741
    %v1743 = vmul.f32 %v1738, %v1741
    %v1744 = vmul.f32 %v1739, %v1741
    %v1745 = vmul.f32 %v1740, %v1741
    %v1746 = vadd.f32 %v1733, %v1742
    %v1747 = vadd.f32 %v1734, %v1743
    %v1748 = vadd.f32 %v1735, %v1744
    %v1749 = vadd.f32 %v1736, %v1745
    %v1750 = vunpack.c.l.bf16 %v1278
    %v1751 = vunpack.c.h.bf16 %v1278
    %v1752 = vunpack.c.l.bf16 %v1279
    %v1753 = vunpack.c.h.bf16 %v1279
    %v1754 = vmul.f32 %v1670, %v1684
    %v1755 = vmul.f32 %v1750, %v1754
    %v1756 = vmul.f32 %v1751, %v1754
    %v1757 = vmul.f32 %v1752, %v1754
    %v1758 = vmul.f32 %v1753, %v1754
    %v1759 = vadd.f32 %v1746, %v1755
    %v1760 = vadd.f32 %v1747, %v1756
    %v1761 = vadd.f32 %v1748, %v1757
    %v1762 = vadd.f32 %v1749, %v1758
    %v1763 = vunpack.c.l.bf16 %v1428
    %v1764 = vunpack.c.h.bf16 %v1428
    %v1765 = vunpack.c.l.bf16 %v1429
    %v1766 = vunpack.c.h.bf16 %v1429
    %v1767 = vmul.f32 %v1673, %v1684
    %v1768 = vmul.f32 %v1763, %v1767
    %v1769 = vmul.f32 %v1764, %v1767
    %v1770 = vmul.f32 %v1765, %v1767
    %v1771 = vmul.f32 %v1766, %v1767
    %v1772 = vadd.f32 %v1759, %v1768
    %v1773 = vadd.f32 %v1760, %v1769
    %v1774 = vadd.f32 %v1761, %v1770
    %v1775 = vadd.f32 %v1762, %v1771
    %v1776 = vunpack.c.l.bf16 %v1578
    %v1777 = vunpack.c.h.bf16 %v1578
    %v1778 = vunpack.c.l.bf16 %v1579
    %v1779 = vunpack.c.h.bf16 %v1579
    %v1780 = vmul.f32 %v1676, %v1684
    %v1781 = vmul.f32 %v1776, %v1780
    %v1782 = vmul.f32 %v1777, %v1780
    %v1783 = vmul.f32 %v1778, %v1780
    %v1784 = vmul.f32 %v1779, %v1780
    %v1785 = vadd.f32 %v1772, %v1781
    %v1786 = vadd.f32 %v1773, %v1782
    %v1787 = vadd.f32 %v1774, %v1783
    %v1788 = vadd.f32 %v1775, %v1784
    %v1789 = vpack.c.bf16 %v161, %v156
    %v1790 = vpack.c.bf16 %v171, %v166
    %v1791 = vpack.c.bf16 %v275, %v270
    %v1792 = vpack.c.bf16 %v285, %v280
    %v1793 = vpack.c.bf16 %v1786, %v1785
    %v1794 = vpack.c.bf16 %v1788, %v1787
    %v1795 = vld [vmem:[%s8] sm:$0xf]
    %v1796 = vld [vmem:[%s8 + $0x4] sm:$0xf]
    %v1797 = vld [vmem:[%s8 + $0x8] sm:$0xf]
    %v1798 = vld [vmem:[%s8 + $0xc] sm:$0xf]
    %1799 = vset.pattern.permute.xlu0 1
    %1800 = vperm.xlu0 %1799, %v49
    %v1801 = vpop.permute.xlu0 %1800
    %1803 = vset.pattern.permute.xlu0 1
    %1804 = vperm.xlu0 %1803, %v50
    %v1805 = vpop.permute.xlu0 %1804
    %1807 = vset.pattern.permute.xlu0 1
    %1808 = vperm.xlu0 %1807, %v51
    %v1809 = vpop.permute.xlu0 %1808
    %1811 = vset.pattern.permute.xlu0 1
    %1812 = vperm.xlu0 %1811, %v52
    %v1813 = vpop.permute.xlu0 %1812
    %v1819 = vunpack.c.l.b16 %v1795
    %v1820 = vunpack.c.l.b16 %v1796
    %v1821 = vunpack.c.l.b16 %v1797
    %v1822 = vunpack.c.l.b16 %v1798
    %v1823 = vpack.c.b16 %v1820, %v1819
    %v1824 = vpack.c.b16 %v1822, %v1821
    %vm1825 = vcmask 785408
    %v1827 = vsel %vm1825, %v1823, 0
    %v1830 = vsel %vm1825, %v1824, 0
    %1832 = vmatprep.subr.bf16.mxu0 0
    %1833 = vmatpush1.bf16.msra.mxu0 %v1789
    %1834 = vmatprep.subr.bf16.mxu0 0
    %1835 = vmatpush1.bf16.msra.mxu0 %v1790
    %1836 = vmatprep.subr.bf16.mxu0 0
    %1837 = vmatpush1.bf16.msra.mxu0 %v1791
    %1838 = vmatprep.subr.bf16.mxu0 0
    %1839 = vmatpush1.bf16.msra.mxu0 %v1792
    %1840 = vmatprep.subr.bf16.mxu0 0
    %1841 = vmatpush1.bf16.msra.mxu0 %v1793
    %1842 = vmatprep.subr.bf16.mxu0 0
    %1843 = vmatpush1.bf16.msra.mxu0 %v1794
    %1844 = vmatprep.subr.bf16.mxu0 0
    %1845 = vmatpush1.bf16.msra.mxu0 0
    %1846 = vmatprep.subr.bf16.mxu0 0
    %1847 = vmatpush1.bf16.msra.mxu0 0
    %1848 = vmatprep.subr.bf16.mxu0 0
    %1849 = vmatpush1.bf16.msra.mxu0 0
    %1850 = vmatprep.subr.bf16.mxu0 0
    %1851 = vmatpush1.bf16.msra.mxu0 0
    %1852 = vmatprep.subr.bf16.mxu0 0
    %1853 = vmatpush1.bf16.msra.mxu0 0
    %1854 = vmatprep.subr.bf16.mxu0 0
    %1855 = vmatpush1.bf16.msra.mxu0 0
    %1856 = vmatprep.subr.bf16.mxu0 0
    %1857 = vmatpush1.bf16.msra.mxu0 0
    %1858 = vmatprep.subr.bf16.mxu0 0
    %1859 = vmatpush1.bf16.msra.mxu0 0
    %1860 = vmatprep.subr.bf16.mxu0 0
    %1861 = vmatpush1.bf16.msra.mxu0 0
    %1862 = vmatprep.subr.bf16.mxu0 0
    %1863 = vmatpush1.bf16.msra.mxu0 0
    %1864 = vmatprep.mubr.bf16.mxu0 0
    %1865 = vmatmul.mubr.bf16.gmra.mrb[0].mxu0 %v1827
    %v1866 = vpop.f32.mrb[0].mxu0
    %v1867 = vadd.f32 %v1801, %v1866
    %v1868 = vpop.f32.mrb[0].mxu0
    %v1869 = vpop.f32.mrb[0].mxu0
    %v1870 = vadd.f32 %v1805, %v1869
    %v1871 = vpop.f32.mrb[0].mxu0
    %1872 = vmatprep.mubr.bf16.mxu0 0
    %1873 = vmatmul.mubr.bf16.gmra.mrb[0].mxu0 %v1830
    %v1874 = vpop.f32.mrb[0].mxu0
    %v1875 = vadd.f32 %v1809, %v1874
    %v1876 = vpop.f32.mrb[0].mxu0
    %v1877 = vpop.f32.mrb[0].mxu0
    %v1878 = vadd.f32 %v1813, %v1877
    %v1879 = vpop.f32.mrb[0].mxu0
    %1880 = vdwg.mxu0
    %v1881 = vmul.f32 %v1867, 0.01
    %v1882 = vmul.f32 %v1870, 0.01
    %v1883 = vmul.f32 %v1875, 0.01
    %v1884 = vmul.f32 %v1878, 0.01
    %v1885 = vmax.f32 %v1867, %v1881
    %v1886 = vmax.f32 %v1870, %v1882
    %v1887 = vmax.f32 %v1875, %v1883
    %v1888 = vmax.f32 %v1878, %v1884
    %v1889 = vld [vmem:[%s9] sm:$0xf]
    %v1890 = vld [vmem:[%s9 + $0x4] sm:$0xf]
    %v1891 = vld [vmem:[%s9 + $0x8] sm:$0xf]
    %v1892 = vld [vmem:[%s9 + $0xc] sm:$0xf]
    %v1893 = vpack.c.bf16 %v1886, %v1885
    %v1894 = vpack.c.bf16 %v1888, %v1887
    %1895 = vset.pattern.permute.xlu0 2
    %1896 = vperm.xlu0 %1895, %v49
    %v1897 = vpop.permute.xlu0 %1896
    %1899 = vset.pattern.permute.xlu0 2
    %1900 = vperm.xlu0 %1899, %v50
    %v1901 = vpop.permute.xlu0 %1900
    %1903 = vset.pattern.permute.xlu0 2
    %1904 = vperm.xlu0 %1903, %v51
    %v1905 = vpop.permute.xlu0 %1904
    %1907 = vset.pattern.permute.xlu0 2
    %1908 = vperm.xlu0 %1907, %v52
    %v1909 = vpop.permute.xlu0 %1908
    %v1915 = vunpack.c.l.b16 %v1889
    %v1916 = vunpack.c.l.b16 %v1890
    %v1917 = vunpack.c.l.b16 %v1891
    %v1918 = vunpack.c.l.b16 %v1892
    %v1919 = vpack.c.b16 %v1916, %v1915
    %v1920 = vpack.c.b16 %v1918, %v1917
    %v1922 = vsel %vm328, %v1919, 0
    %v1925 = vsel %vm328, %v1920, 0
    %1927 = vmatprep.subr.bf16.mxu0 0
    %1928 = vmatpush1.bf16.msra.mxu0 %v1893
    %1929 = vmatprep.subr.bf16.mxu0 0
    %1930 = vmatpush1.bf16.msra.mxu0 %v1894
    %1931 = vmatprep.subr.bf16.mxu0 0
    %1932 = vmatpush1.bf16.msra.mxu0 0
    %1933 = vmatprep.subr.bf16.mxu0 0
    %1934 = vmatpush1.bf16.msra.mxu0 0
    %1935 = vmatprep.subr.bf16.mxu0 0
    %1936 = vmatpush1.bf16.msra.mxu0 0
    %1937 = vmatprep.subr.bf16.mxu0 0
    %1938 = vmatpush1.bf16.msra.mxu0 0
    %1939 = vmatprep.subr.bf16.mxu0 0
    %1940 = vmatpush1.bf16.msra.mxu0 0
    %1941 = vmatprep.subr.bf16.mxu0 0
    %1942 = vmatpush1.bf16.msra.mxu0 0
    %1943 = vmatprep.subr.bf16.mxu0 0
    %1944 = vmatpush1.bf16.msra.mxu0 0
    %1945 = vmatprep.subr.bf16.mxu0 0
    %1946 = vmatpush1.bf16.msra.mxu0 0
    %1947 = vmatprep.subr.bf16.mxu0 0
    %1948 = vmatpush1.bf16.msra.mxu0 0
    %1949 = vmatprep.subr.bf16.mxu0 0
    %1950 = vmatpush1.bf16.msra.mxu0 0
    %1951 = vmatprep.subr.bf16.mxu0 0
    %1952 = vmatpush1.bf16.msra.mxu0 0
    %1953 = vmatprep.subr.bf16.mxu0 0
    %1954 = vmatpush1.bf16.msra.mxu0 0
    %1955 = vmatprep.subr.bf16.mxu0 0
    %1956 = vmatpush1.bf16.msra.mxu0 0
    %1957 = vmatprep.subr.bf16.mxu0 0
    %1958 = vmatpush1.bf16.msra.mxu0 0
    %1959 = vmatprep.mubr.bf16.mxu0 0
    %1960 = vmatmul.mubr.bf16.gmra.mrb[0].mxu0 %v1922
    %v1961 = vpop.f32.mrb[0].mxu0
    %v1962 = vadd.f32 %v1897, %v1961
    %v1963 = vpop.f32.mrb[0].mxu0
    %v1964 = vpop.f32.mrb[0].mxu0
    %v1965 = vadd.f32 %v1901, %v1964
    %v1966 = vpop.f32.mrb[0].mxu0
    %1967 = vmatprep.mubr.bf16.mxu0 0
    %1968 = vmatmul.mubr.bf16.gmra.mrb[0].mxu0 %v1925
    %v1969 = vpop.f32.mrb[0].mxu0
    %v1970 = vadd.f32 %v1905, %v1969
    %v1971 = vpop.f32.mrb[0].mxu0
    %v1972 = vpop.f32.mrb[0].mxu0
    %v1973 = vadd.f32 %v1909, %v1972
    %v1974 = vpop.f32.mrb[0].mxu0
    %1975 = vdwg.mxu0
    %v1976 = vmul.f32 %v1962, 0.01
    %v1977 = vmul.f32 %v1965, 0.01
    %v1978 = vmul.f32 %v1970, 0.01
    %v1979 = vmul.f32 %v1973, 0.01
    %v1980 = vmax.f32 %v1962, %v1976
    %v1981 = vmax.f32 %v1965, %v1977
    %v1982 = vmax.f32 %v1970, %v1978
    %v1983 = vmax.f32 %v1973, %v1979
    %v1984 = vld [vmem:[%s10] sm:$0x1]
    %v1985 = vpack.c.bf16 %v1981, %v1980
    %v1986 = vpack.c.bf16 %v1983, %v1982
    %v1987 = vld [vmem:[%s12] sm:$0x3]
    %1989 = vset.pattern.permute.xlu0 0
    %1990 = vperm.xlu0 %1989, %v1987
    %v1991 = vpop.permute.xlu0 %1990
    %v1994 = vsel %vm328, %v1984, 0
    %1996 = vmatprep.subr.bf16.mxu0 0
    %1997 = vmatpush1.bf16.msra.mxu0 %v1985
    %1998 = vmatprep.subr.bf16.mxu0 0
    %1999 = vmatpush1.bf16.msra.mxu0 %v1986
    %2000 = vmatprep.subr.bf16.mxu0 0
    %2001 = vmatpush1.bf16.msra.mxu0 0
    %2002 = vmatprep.subr.bf16.mxu0 0
    %2003 = vmatpush1.bf16.msra.mxu0 0
    %2004 = vmatprep.subr.bf16.mxu0 0
    %2005 = vmatpush1.bf16.msra.mxu0 0
    %2006 = vmatprep.subr.bf16.mxu0 0
    %2007 = vmatpush1.bf16.msra.mxu0 0
    %2008 = vmatprep.subr.bf16.mxu0 0
    %2009 = vmatpush1.bf16.msra.mxu0 0
    %2010 = vmatprep.subr.bf16.mxu0 0
    %2011 = vmatpush1.bf16.msra.mxu0 0
    %2012 = vmatprep.subr.bf16.mxu0 0
    %2013 = vmatpush1.bf16.msra.mxu0 0
    %2014 = vmatprep.subr.bf16.mxu0 0
    %2015 = vmatpush1.bf16.msra.mxu0 0
    %2016 = vmatprep.subr.bf16.mxu0 0
    %2017 = vmatpush1.bf16.msra.mxu0 0
    %2018 = vmatprep.subr.bf16.mxu0 0
    %2019 = vmatpush1.bf16.msra.mxu0 0
    %2020 = vmatprep.subr.bf16.mxu0 0
    %2021 = vmatpush1.bf16.msra.mxu0 0
    %2022 = vmatprep.subr.bf16.mxu0 0
    %2023 = vmatpush1.bf16.msra.mxu0 0
    %2024 = vmatprep.subr.bf16.mxu0 0
    %2025 = vmatpush1.bf16.msra.mxu0 0
    %2026 = vmatprep.subr.bf16.mxu0 0
    %2027 = vmatpush1.bf16.msra.mxu0 0
    %2028 = vmatprep.mubr.bf16.mxu0 0
    %2029 = vmatmul.mubr.bf16.gmra.mrb[0].mxu0 %v1994
    %v2030 = vpop.f32.mrb[0].mxu0
    %v2031 = vadd.f32 %v1991, %v2030
    %v2032 = vpop.f32.mrb[0].mxu0
    %v2033 = vpop.f32.mrb[0].mxu0
    %v2034 = vpop.f32.mrb[0].mxu0
    %2035 = vdwg.mxu0
    %v2036 = vsub.f32 0.0, %v2031
    %v2037 = vmul.f32 %v2036, 1.442695
    %v2038 = vpow.pop %v2037
    %v2039 = vadd.f32 %v2038, 1.0
    %v2040 = vrcp.pop %v2039
    %v2041 = vmul.f32 1.0, %v2040
    %vm2042 = vcmp.eq.s32.totalorder %v56, 0
    %v2043 = vmax.f32 %v2031, 0.0
    %v2044 = vsel %vm2042, %v2041, %v2043
    %2045 = vst [vmem:[#allocation4] sm:$0x3] %v2044
    %2046 = vst [vmem:[#allocation2] sm:$0xff] %v1980
    %2047 = vst [vmem:[#allocation2 + $0x8] sm:$0xff] %v1981
    %2048 = vst [vmem:[#allocation2 + $0x10] sm:$0xff] %v1982
    %2049 = vst [vmem:[#allocation2 + $0x18] sm:$0xff] %v1983
    // Predicated region
    $region54: #{tpu_custom_call.1} parent=1 // pred_check
      _
    $region55: #{tpu_custom_call.1} parent=1 // pred_check_branch
      %2051 = sbr.rel (0) target = $region57
    $region56: #{tpu_custom_call.1} parent=1 // pred_region
      %s2053 = ssub.s32 512, 512
      %2054 = vsyncadd [#allocation3], %s2053
      %s2055 = sshll.u32 [#allocation2], 4
      %s2056 = int_to_ptr.vmem [resolvable:$true] %s2055
      %2061 = dma.vmem_to_hbm [thread:$0]  %s2056, 512, %s13, [#allocation3], 128, 128, 8
    $region57: #{tpu_custom_call.1} parent=1 // pred_fallthru
      _
    // Predicated region
    $region58: #{tpu_custom_call.1} parent=1 // pred_check
      _
    $region59: #{tpu_custom_call.1} parent=1 // pred_check_branch
      %2063 = sbr.rel (0) target = $region61
    $region60: #{tpu_custom_call.1} parent=1 // pred_region
      %s2065 = ssub.s32 32, 32
      %2066 = vsyncadd [#allocation5], %s2065
      %s2068 = sshll.u32 [#allocation4], 4
      %s2069 = int_to_ptr.vmem [resolvable:$true] %s2068
      %2071 = dma.vmem_to_hbm [thread:$0]  %s2069, 32, %s14, [#allocation5]
    $region61: #{tpu_custom_call.1} parent=1 // pred_fallthru
      _
    // Predicated region
    $region62: #{tpu_custom_call.1} parent=1 // pred_check
      _
    $region63: #{tpu_custom_call.1} parent=1 // pred_check_branch
      %2073 = sbr.rel (0) target = $region65
    $region64: #{tpu_custom_call.1} parent=1 // pred_region
      %2074 = dma.done [#allocation3], 512
    $region65: #{tpu_custom_call.1} parent=1 // pred_fallthru
      _
    // Predicated region
    $region66: #{tpu_custom_call.1} parent=1 // pred_check
      _
    $region67: #{tpu_custom_call.1} parent=1 // pred_check_branch
      %2076 = sbr.rel (0) target = $region69
    $region68: #{tpu_custom_call.1} parent=1 // pred_region
      %2077 = dma.done [#allocation5], 32
    $region69: #{tpu_custom_call.1} parent=1 // pred_fallthru
      _
    %2078 = vsyncpa [#allocation3], 1
    %2079 = vsyncpa [#allocation5], 1

</llo_original>
